<compile_context>
chip_gen: v6e
topology: v6e:2x2x1
jax: 0.10.0
libtpu: 0.0.40
codegen_flags: <defaults>
</compile_context>

<pallas_src>
import jax
import jax.numpy as jnp
from jax.experimental import pallas as pl
from jax.experimental.pallas import tpu as pltpu

LANE = 128
SUBLANE = 8


def _round_up(n, m):
    return (n + m - 1) // m * m


def _mlp_kernel(x_ref,
                w1_ref, b1_ref,
                w2_ref, b2_ref,
                w3_ref, b3_ref,
                w4_ref, b4_ref,
                o_ref):
    """Fused 4-layer MLP. bf16 MXU operands, f32 accumulation + activations."""
    bf16 = jnp.bfloat16
    x = x_ref[...]                                                 # bf16 [tb, 128]

    # fc1: Linear + LeakyReLU (negative_slope = 0.01, PyTorch default)
    h = jnp.dot(x, w1_ref[...], preferred_element_type=jnp.float32) + b1_ref[...]
    h = jnp.where(h >= 0, h, 0.01 * h)

    # fc2: Linear + LeakyReLU
    h = jnp.dot(h.astype(bf16), w2_ref[...],
                preferred_element_type=jnp.float32) + b2_ref[...]
    h = jnp.where(h >= 0, h, 0.01 * h)

    # fc3: Linear + Sigmoid.  Padded h3 columns evaluate to sigmoid(0)=0.5 but
    # the corresponding rows of w4 are zero, so they contribute nothing.
    h = jnp.dot(h.astype(bf16), w3_ref[...],
                preferred_element_type=jnp.float32) + b3_ref[...]
    h = jax.nn.sigmoid(h)

    # out: Linear
    y = jnp.dot(h.astype(bf16), w4_ref[...],
                preferred_element_type=jnp.float32) + b4_ref[...]
    o_ref[...] = y.astype(o_ref.dtype)


def bow_net_forward(x, params, *, tb=256):
    """Run the fused MLP kernel, tiling over the batch dimension.

    Pads batch to a multiple of the (sublane-aligned) batch tile and all
    feature dims to 128 lanes; zero padding is mathematically inert and the
    padded output columns / rows are sliced off before returning.
    """
    (w1, b1), (w2, b2), (w3, b3), (w4, b4) = params
    B, inf = x.shape
    out = w4.shape[1]

    d_in = _round_up(inf, LANE)
    d_h1 = _round_up(w1.shape[1], LANE)
    d_h2 = _round_up(w2.shape[1], LANE)
    d_h3 = _round_up(w3.shape[1], LANE)
    d_out = _round_up(out, LANE)

    tb = _round_up(tb, SUBLANE)
    b_tile = min(tb, _round_up(B, SUBLANE))
    b_pad = _round_up(B, b_tile)
    n_tiles = b_pad // b_tile

    def pad2(a, rows, cols):
        return jnp.pad(a, ((0, rows - a.shape[0]), (0, cols - a.shape[1])))

    bf16 = jnp.bfloat16
    xp = pad2(x, b_pad, d_in).astype(bf16)
    w1p = pad2(w1, d_in, d_h1).astype(bf16)
    w2p = pad2(w2, d_h1, d_h2).astype(bf16)
    w3p = pad2(w3, d_h2, d_h3).astype(bf16)
    w4p = pad2(w4, d_h3, d_out).astype(bf16)
    b1p = pad2(b1, 1, d_h1)     # biases stay f32: added to the f32 accumulator
    b2p = pad2(b2, 1, d_h2)
    b3p = pad2(b3, 1, d_h3)
    b4p = pad2(b4, 1, d_out)

    # Weights/biases: single full-array block, constant index_map => resident
    # across all batch tiles, never re-fetched per grid step.
    def full_spec(arr):
        return pl.BlockSpec(arr.shape, lambda i: (0, 0))

    grid_spec = pltpu.PrefetchScalarGridSpec(
        num_scalar_prefetch=0,
        grid=(n_tiles,),
        in_specs=[
            pl.BlockSpec((b_tile, d_in), lambda i: (i, 0)),    # x batch tile
            full_spec(w1p), full_spec(b1p),
            full_spec(w2p), full_spec(b2p),
            full_spec(w3p), full_spec(b3p),
            full_spec(w4p), full_spec(b4p),
        ],
        out_specs=pl.BlockSpec((b_tile, d_out), lambda i: (i, 0)),
    )

    y_pad = pl.pallas_call(
        _mlp_kernel,
        out_shape=jax.ShapeDtypeStruct((b_pad, d_out), jnp.float32),
        grid_spec=grid_spec,
        compiler_params=pltpu.CompilerParams(
            # batch tiles are independent -> shard grid across v7x TensorCores
            dimension_semantics=("parallel",)),
    )(xp, w1p, b1p, w2p, b2p, w3p, b3p, w4p, b4p)

    return y_pad[:B, :out]


def init_params(key, inf, h1, h2, h3, out):
    """Deterministic init mimicking nn.Linear (uniform +/- 1/sqrt(fan_in)).

    Weights are stored [in, out] (transpose of PyTorch's [out, in]); biases [1, out].
    """
    dims = [(inf, h1), (h1, h2), (h2, h3), (h3, out)]
    params = []
    for i, (din, dout) in enumerate(dims):
        kw, kb = jax.random.split(jax.random.fold_in(key, i))
        bound = 1.0 / jnp.sqrt(jnp.float32(din))
        w = jax.random.uniform(kw, (din, dout), jnp.float32, -bound, bound)
        b = jax.random.uniform(kb, (1, dout), jnp.float32, -bound, bound)
        params.append((w, b))
    return params


def reference_forward(x, params):
    """Plain-JAX reference with matching bf16 matmul operands / f32 accumulation."""
    bf16 = jnp.bfloat16
    (w1, b1), (w2, b2), (w3, b3), (w4, b4) = params

    def dot(a, w):
        return jnp.dot(a.astype(bf16), w.astype(bf16),
                       preferred_element_type=jnp.float32)

    h = dot(x, w1) + b1
    h = jnp.where(h >= 0, h, 0.01 * h)
    h = dot(h, w2) + b2
    h = jnp.where(h >= 0, h, 0.01 * h)
    h = dot(h, w3) + b3
    h = jax.nn.sigmoid(h)
    return dot(h, w4) + b4


if __name__ == "__main__":
    # BOW MLP shapes: Net(inf, h1, h2, h3, out).  Batch kept small but large
    # enough that the parallel grid has 2 steps (tb=256 -> both v7x TCs busy).
    B, inf, h1, h2, h3, out = 512, 32, 64, 64, 32, 8

    key = jax.random.PRNGKey(0)
    kx, kp = jax.random.split(key)
    x = jax.random.normal(kx, (B, inf), jnp.float32)
    params = init_params(kp, inf, h1, h2, h3, out)

    y = bow_net_forward(x, params, tb=256)
    y = jax.block_until_ready(y)

    y_ref = reference_forward(x, params)
    assert y.shape == (B, out)
    assert jnp.allclose(y, y_ref, atol=2e-3, rtol=2e-3), \
        float(jnp.max(jnp.abs(y - y_ref)))

    print("KERNEL_OK")
</pallas_src>

<mosaic_0001>
module attributes {stable_mosaic.version = 11 : i64} {
  func.func @_mlp_kernel(%arg0: i32, %arg1: memref<256x128xbf16, #tpu.memory_space<vmem>>, %arg2: memref<128x128xbf16, #tpu.memory_space<vmem>>, %arg3: memref<1x128xf32, #tpu.memory_space<vmem>>, %arg4: memref<128x128xbf16, #tpu.memory_space<vmem>>, %arg5: memref<1x128xf32, #tpu.memory_space<vmem>>, %arg6: memref<128x128xbf16, #tpu.memory_space<vmem>>, %arg7: memref<1x128xf32, #tpu.memory_space<vmem>>, %arg8: memref<128x128xbf16, #tpu.memory_space<vmem>>, %arg9: memref<1x128xf32, #tpu.memory_space<vmem>>, %arg10: memref<256x128xf32, #tpu.memory_space<vmem>>) attributes {dimension_semantics = [#tpu.dimension_semantics<parallel>], iteration_bounds = array<i64: 2>, scalar_prefetch = 0 : i64, scratch_operands = 0 : i64, tpu.core_type = #tpu.core_type<tc>, window_params = [{transform_indices = @transform_0, window_bounds = array<i64: 256, 128>}, {pipeline_mode = #tpu.pipeline_mode<synchronous>, transform_indices = @transform_1, window_bounds = array<i64: 128, 128>}, {pipeline_mode = #tpu.pipeline_mode<synchronous>, transform_indices = @transform_2, window_bounds = array<i64: 1, 128>}, {pipeline_mode = #tpu.pipeline_mode<synchronous>, transform_indices = @transform_3, window_bounds = array<i64: 128, 128>}, {pipeline_mode = #tpu.pipeline_mode<synchronous>, transform_indices = @transform_4, window_bounds = array<i64: 1, 128>}, {pipeline_mode = #tpu.pipeline_mode<synchronous>, transform_indices = @transform_5, window_bounds = array<i64: 128, 128>}, {pipeline_mode = #tpu.pipeline_mode<synchronous>, transform_indices = @transform_6, window_bounds = array<i64: 1, 128>}, {pipeline_mode = #tpu.pipeline_mode<synchronous>, transform_indices = @transform_7, window_bounds = array<i64: 128, 128>}, {pipeline_mode = #tpu.pipeline_mode<synchronous>, transform_indices = @transform_8, window_bounds = array<i64: 1, 128>}, {transform_indices = @transform_9, window_bounds = array<i64: 256, 128>}]} {
    %c0 = arith.constant 0 : index
    %c0_0 = arith.constant 0 : index
    %0 = vector.load %arg1[%c0, %c0_0] : memref<256x128xbf16, #tpu.memory_space<vmem>>, vector<256x128xbf16>
    %c0_1 = arith.constant 0 : index
    %c0_2 = arith.constant 0 : index
    %1 = vector.load %arg2[%c0_1, %c0_2] : memref<128x128xbf16, #tpu.memory_space<vmem>>, vector<128x128xbf16>
    %cst = arith.constant dense<0.000000e+00> : vector<256x128xf32>
    %2 = tpu.matmul %0, %1, %cst {dimension_numbers = #tpu.dot_dimension_numbers<[1], [0], [0], [1], [0, 0, 1, 1], [], []>} : vector<256x128xbf16>, vector<128x128xbf16>, vector<256x128xf32> -> vector<256x128xf32>
    %c0_3 = arith.constant 0 : index
    %c0_4 = arith.constant 0 : index
    %3 = vector.load %arg3[%c0_3, %c0_4] : memref<1x128xf32, #tpu.memory_space<vmem>>, vector<1x128xf32>
    %4 = vector.broadcast %3 : vector<1x128xf32> to vector<256x128xf32>
    %5 = arith.addf %2, %4 : vector<256x128xf32>
    %cst_5 = arith.constant 0.000000e+00 : f32
    %6 = vector.broadcast %cst_5 : f32 to vector<256x128xf32>
    %7 = arith.cmpf oge, %5, %6 : vector<256x128xf32>
    %cst_6 = arith.constant 0.00999999977 : f32
    %8 = vector.broadcast %cst_6 : f32 to vector<256x128xf32>
    %9 = arith.mulf %8, %5 : vector<256x128xf32>
    %10 = arith.select %7, %5, %9 : vector<256x128xi1>, vector<256x128xf32>
    %11 = arith.truncf %10 : vector<256x128xf32> to vector<256x128xbf16>
    %c0_7 = arith.constant 0 : index
    %c0_8 = arith.constant 0 : index
    %12 = vector.load %arg4[%c0_7, %c0_8] : memref<128x128xbf16, #tpu.memory_space<vmem>>, vector<128x128xbf16>
    %cst_9 = arith.constant dense<0.000000e+00> : vector<256x128xf32>
    %13 = tpu.matmul %11, %12, %cst_9 {dimension_numbers = #tpu.dot_dimension_numbers<[1], [0], [0], [1], [0, 0, 1, 1], [], []>} : vector<256x128xbf16>, vector<128x128xbf16>, vector<256x128xf32> -> vector<256x128xf32>
    %c0_10 = arith.constant 0 : index
    %c0_11 = arith.constant 0 : index
    %14 = vector.load %arg5[%c0_10, %c0_11] : memref<1x128xf32, #tpu.memory_space<vmem>>, vector<1x128xf32>
    %15 = vector.broadcast %14 : vector<1x128xf32> to vector<256x128xf32>
    %16 = arith.addf %13, %15 : vector<256x128xf32>
    %cst_12 = arith.constant 0.000000e+00 : f32
    %17 = vector.broadcast %cst_12 : f32 to vector<256x128xf32>
    %18 = arith.cmpf oge, %16, %17 : vector<256x128xf32>
    %cst_13 = arith.constant 0.00999999977 : f32
    %19 = vector.broadcast %cst_13 : f32 to vector<256x128xf32>
    %20 = arith.mulf %19, %16 : vector<256x128xf32>
    %21 = arith.select %18, %16, %20 : vector<256x128xi1>, vector<256x128xf32>
    %22 = arith.truncf %21 : vector<256x128xf32> to vector<256x128xbf16>
    %c0_14 = arith.constant 0 : index
    %c0_15 = arith.constant 0 : index
    %23 = vector.load %arg6[%c0_14, %c0_15] : memref<128x128xbf16, #tpu.memory_space<vmem>>, vector<128x128xbf16>
    %cst_16 = arith.constant dense<0.000000e+00> : vector<256x128xf32>
    %24 = tpu.matmul %22, %23, %cst_16 {dimension_numbers = #tpu.dot_dimension_numbers<[1], [0], [0], [1], [0, 0, 1, 1], [], []>} : vector<256x128xbf16>, vector<128x128xbf16>, vector<256x128xf32> -> vector<256x128xf32>
    %c0_17 = arith.constant 0 : index
    %c0_18 = arith.constant 0 : index
    %25 = vector.load %arg7[%c0_17, %c0_18] : memref<1x128xf32, #tpu.memory_space<vmem>>, vector<1x128xf32>
    %26 = vector.broadcast %25 : vector<1x128xf32> to vector<256x128xf32>
    %27 = arith.addf %24, %26 : vector<256x128xf32>
    %28 = arith.negf %27 : vector<256x128xf32>
    %29 = math.exp %28 : vector<256x128xf32>
    %cst_19 = arith.constant 1.000000e+00 : f32
    %30 = vector.broadcast %cst_19 : f32 to vector<256x128xf32>
    %31 = arith.addf %30, %29 : vector<256x128xf32>
    %32 = arith.divf %30, %31 : vector<256x128xf32>
    %33 = arith.truncf %32 : vector<256x128xf32> to vector<256x128xbf16>
    %c0_20 = arith.constant 0 : index
    %c0_21 = arith.constant 0 : index
    %34 = vector.load %arg8[%c0_20, %c0_21] : memref<128x128xbf16, #tpu.memory_space<vmem>>, vector<128x128xbf16>
    %cst_22 = arith.constant dense<0.000000e+00> : vector<256x128xf32>
    %35 = tpu.matmul %33, %34, %cst_22 {dimension_numbers = #tpu.dot_dimension_numbers<[1], [0], [0], [1], [0, 0, 1, 1], [], []>} : vector<256x128xbf16>, vector<128x128xbf16>, vector<256x128xf32> -> vector<256x128xf32>
    %c0_23 = arith.constant 0 : index
    %c0_24 = arith.constant 0 : index
    %36 = vector.load %arg9[%c0_23, %c0_24] : memref<1x128xf32, #tpu.memory_space<vmem>>, vector<1x128xf32>
    %37 = vector.broadcast %36 : vector<1x128xf32> to vector<256x128xf32>
    %38 = arith.addf %35, %37 : vector<256x128xf32>
    %c0_25 = arith.constant 0 : index
    %c0_26 = arith.constant 0 : index
    %39 = vector.load %arg10[%c0_25, %c0_26] : memref<256x128xf32, #tpu.memory_space<vmem>>, vector<256x128xf32>
    tpu.vector_store %arg10[%c0_25, %c0_26], %38 {strides = array<i32>} : memref<256x128xf32, #tpu.memory_space<vmem>>, vector<256x128xf32>,
    return
  }
  func.func @transform_0(%arg0: i32) -> (i32, i32) {
    %c0_i32 = arith.constant 0 : i32
    %c0_i32_0 = arith.constant 0 : i32
    return %arg0, %c0_i32 : i32, i32
  }
  func.func @transform_1(%arg0: i32) -> (i32, i32) {
    %c0_i32 = arith.constant 0 : i32
    %c0_i32_0 = arith.constant 0 : i32
    %c0_i32_1 = arith.constant 0 : i32
    return %c0_i32, %c0_i32_0 : i32, i32
  }
  func.func @transform_2(%arg0: i32) -> (i32, i32) {
    %c0_i32 = arith.constant 0 : i32
    %c0_i32_0 = arith.constant 0 : i32
    %c0_i32_1 = arith.constant 0 : i32
    return %c0_i32, %c0_i32_0 : i32, i32
  }
  func.func @transform_3(%arg0: i32) -> (i32, i32) {
    %c0_i32 = arith.constant 0 : i32
    %c0_i32_0 = arith.constant 0 : i32
    %c0_i32_1 = arith.constant 0 : i32
    return %c0_i32, %c0_i32_0 : i32, i32
  }
  func.func @transform_4(%arg0: i32) -> (i32, i32) {
    %c0_i32 = arith.constant 0 : i32
    %c0_i32_0 = arith.constant 0 : i32
    %c0_i32_1 = arith.constant 0 : i32
    return %c0_i32, %c0_i32_0 : i32, i32
  }
  func.func @transform_5(%arg0: i32) -> (i32, i32) {
    %c0_i32 = arith.constant 0 : i32
    %c0_i32_0 = arith.constant 0 : i32
    %c0_i32_1 = arith.constant 0 : i32
    return %c0_i32, %c0_i32_0 : i32, i32
  }
  func.func @transform_6(%arg0: i32) -> (i32, i32) {
    %c0_i32 = arith.constant 0 : i32
    %c0_i32_0 = arith.constant 0 : i32
    %c0_i32_1 = arith.constant 0 : i32
    return %c0_i32, %c0_i32_0 : i32, i32
  }
  func.func @transform_7(%arg0: i32) -> (i32, i32) {
    %c0_i32 = arith.constant 0 : i32
    %c0_i32_0 = arith.constant 0 : i32
    %c0_i32_1 = arith.constant 0 : i32
    return %c0_i32, %c0_i32_0 : i32, i32
  }
  func.func @transform_8(%arg0: i32) -> (i32, i32) {
    %c0_i32 = arith.constant 0 : i32
    %c0_i32_0 = arith.constant 0 : i32
    %c0_i32_1 = arith.constant 0 : i32
    return %c0_i32, %c0_i32_0 : i32, i32
  }
  func.func @transform_9(%arg0: i32) -> (i32, i32) {
    %c0_i32 = arith.constant 0 : i32
    %c0_i32_0 = arith.constant 0 : i32
    return %arg0, %c0_i32 : i32, i32
  }
}

</mosaic_0001>

<llo_original>
// kernel: tpu_custom_call.1
$region0: #{tpu_custom_call.1}
  #allocation0 [shape = 'u32[]', space=smem, size = 0x4, offset = 0x4, fixed_abs, tag = 'smem constant byte address 0x4 - core index']
  #allocation1 [shape = 'u32[144,128]{1,0:T(1,128)}', space=vmem, size = 0x12000, scoped, tag = 'internal scratch']
  %s0 = inlined_call_operand.hbm [shape: bf16[512,128], index: 0, kind: input, shape index: {}]
  %s1 = inlined_call_operand.hbm [shape: bf16[128,128], index: 1, kind: input, shape index: {}]
  %s2 = inlined_call_operand.vmem [shape: f32[1,128], index: 2, kind: input, shape index: {}]
  %s3 = inlined_call_operand.hbm [shape: bf16[128,128], index: 3, kind: input, shape index: {}]
  %s4 = inlined_call_operand.vmem [shape: f32[1,128], index: 4, kind: input, shape index: {}]
  %s5 = inlined_call_operand.hbm [shape: bf16[128,128], index: 5, kind: input, shape index: {}]
  %s6 = inlined_call_operand.vmem [shape: f32[1,128], index: 6, kind: input, shape index: {}]
  %s7 = inlined_call_operand.hbm [shape: bf16[128,128], index: 7, kind: input, shape index: {}]
  %s8 = inlined_call_operand.vmem [shape: f32[1,128], index: 8, kind: input, shape index: {}]
  %s9 = inlined_call_operand.hbm [shape: f32[512,128], index: 9, kind: output, shape index: {}]
  %s10 = sld [smem:[#allocation0]]
  $region89: #{tpu_custom_call.1} parent=0
    _
  %s12 = ssub.s32 1, %s10
  %s13 = scalar_select 0, %s12, %s10
  $region1: #{tpu_custom_call.1} parent=0
    #allocation2 [shape = 'u8[131072]{0}', space=vmem, size = 0x20000, scoped, tag = 'input window, operand 0']
    #allocation3 [shape = 's32[2]{0}', space=sflag, size = 0x8, scoped, tag = 'scoped memory for tpu_custom_call.1']
    #allocation4 [shape = 's32[2]{0}', space=sflag, size = 0x8, scoped, tag = 'scoped memory for tpu_custom_call.1']
    #allocation5 [shape = 'u8[32768]{0}', space=vmem, size = 0x8000, scoped, tag = 'input window, operand 1, single buffered']
    #allocation6 [shape = 's32[1]{0}', space=sflag, size = 0x4, scoped, tag = 'scoped memory for tpu_custom_call.1']
    #allocation7 [shape = 'u8[32768]{0}', space=vmem, size = 0x8000, scoped, tag = 'input window, operand 3, single buffered']
    #allocation8 [shape = 'u8[32768]{0}', space=vmem, size = 0x8000, scoped, tag = 'input window, operand 5, single buffered']
    #allocation9 [shape = 's32[1]{0}', space=sflag, size = 0x4, scoped, tag = 'scoped memory for tpu_custom_call.1']
    #allocation10 [shape = 'u8[32768]{0}', space=vmem, size = 0x8000, scoped, tag = 'input window, operand 7, single buffered']
    #allocation11 [shape = 'u8[262144]{0}', space=vmem, size = 0x40000, scoped, tag = 'output window, operand 0']
    %14 = vsyncpa [#allocation3], 0
    %s15 = scalar_lea.sflag [#allocation3], 1
    %16 = vsyncpa %s15, 0
    %17 = vsyncpa [#allocation6], 0
    %18 = vsyncpa [#allocation9], 0
    %19 = vsyncpa [#allocation4], 0
    %s20 = scalar_lea.sflag [#allocation4], 1
    %21 = vsyncpa %s20, 0
    loop: start=0, step=1, limit=4
    $region2: #{tpu_custom_call.1} parent=1 // loop_pre_header
      _
    $region3: #{tpu_custom_call.1} parent=1 // loop_header
      %s23 = sphi 0, %s27
      %p24 = scmp.ge.s32.totalorder %s23, 4
      %s33 = sphi 0, %s35
      %s36 = sphi 0, %s33
      %s37 = sphi 0, %s36
      %s53 = sphi 0, %s37
      %s57 = sphi 0, %s57
      %s59 = sphi 0, %s57
      %s60 = sphi 0, %s59
      %s74 = sphi 0, %s60
      %s78 = sphi 0, %s78
      %s80 = sphi 0, %s78
      %s81 = sphi 0, %s80
      %s95 = sphi 0, %s81
      %s99 = sphi 0, %s99
      %s101 = sphi 0, %s99
      %s102 = sphi 0, %s101
      %s116 = sphi 0, %s102
      %s120 = sphi 0, %s120
      %s122 = sphi 0, %s120
      %s123 = sphi 0, %s122
      %s137 = sphi 0, %s123
      %s141 = sphi 0, %s141
      %s143 = sphi 0, %s141
      %s144 = sphi 0, %s143
      %s158 = sphi 0, %s144
      %s162 = sphi 0, %s162
      %s164 = sphi 0, %s162
      %s165 = sphi 0, %s164
      %s179 = sphi 0, %s165
      %s183 = sphi 0, %s183
      %s185 = sphi 0, %s183
      %s186 = sphi 0, %s185
      %s200 = sphi 0, %s186
      %s204 = sphi 0, %s204
      %s206 = sphi 0, %s204
      %s207 = sphi 0, %s206
      %s221 = sphi 0, %s207
      %s227 = sphi 0, %s229
      %s230 = sphi 0, %s227
      %s231 = sphi 0, %s230
      %s247 = sphi 0, %s231
    $region4: #{tpu_custom_call.1} parent=1 // loop_header_branch
      %26 = sbr.rel (%p24) target = $region8
    $region5: #{tpu_custom_call.1} parent=1 // loop_body
      %s28 = ssub.s32 %s23, 1
      %s29 = ssub.s32 %s23, 2
      %s30 = sadd.s32 %s23, 1
      %s31 = ssub.s32 %s23, %s30
      %p32 = scmp.eq.s32.totalorder %s31, 0
      %s34 = sadd.s32 %s33, 1
      %s35 = scalar_select %p32, %s33, %s34
      %p38 = pneg %p32
      %p39 = scmp.eq.s32.totalorder %s23, 1
      %p40 = por %p38, %p39
      %p41 = scmp.ne.s32.totalorder %s33, %s36
      %p42 = scmp.eq.s32.totalorder %s23, 0
      %p43 = por %p41, %p42
      %p44 = scmp.ne.s32.totalorder %s33, %s36
      %p45 = scmp.eq.s32.totalorder %s28, 1
      %p46 = por %p44, %p45
      %p47 = scmp.ne.s32.totalorder %s36, %s37
      %p48 = scmp.eq.s32.totalorder %s28, 0
      %p49 = por %p47, %p48
      %p50 = scmp.ne.s32.totalorder %s36, %s37
      %p51 = scmp.eq.s32.totalorder %s29, 1
      %p52 = por %p50, %p51
      %p54 = scmp.ne.s32.totalorder %s37, %s53
      %p55 = scmp.eq.s32.totalorder %s29, 0
      %p56 = por %p54, %p55
      %s58 = sadd.s32 %s57, 1
      %p61 = scmp.eq.s32.totalorder %s23, 1
      %p62 = scmp.ne.s32.totalorder %s57, %s59
      %p63 = scmp.eq.s32.totalorder %s23, 0
      %p64 = por %p62, %p63
      %p65 = scmp.ne.s32.totalorder %s57, %s59
      %p66 = scmp.eq.s32.totalorder %s28, 1
      %p67 = por %p65, %p66
      %p68 = scmp.ne.s32.totalorder %s59, %s60
      %p69 = scmp.eq.s32.totalorder %s28, 0
      %p70 = por %p68, %p69
      %p71 = scmp.ne.s32.totalorder %s59, %s60
      %p72 = scmp.eq.s32.totalorder %s29, 1
      %p73 = por %p71, %p72
      %p75 = scmp.ne.s32.totalorder %s60, %s74
      %p76 = scmp.eq.s32.totalorder %s29, 0
      %p77 = por %p75, %p76
      %s79 = sadd.s32 %s78, 1
      %p82 = scmp.eq.s32.totalorder %s23, 1
      %p83 = scmp.ne.s32.totalorder %s78, %s80
      %p84 = scmp.eq.s32.totalorder %s23, 0
      %p85 = por %p83, %p84
      %p86 = scmp.ne.s32.totalorder %s78, %s80
      %p87 = scmp.eq.s32.totalorder %s28, 1
      %p88 = por %p86, %p87
      %p89 = scmp.ne.s32.totalorder %s80, %s81
      %p90 = scmp.eq.s32.totalorder %s28, 0
      %p91 = por %p89, %p90
      %p92 = scmp.ne.s32.totalorder %s80, %s81
      %p93 = scmp.eq.s32.totalorder %s29, 1
      %p94 = por %p92, %p93
      %p96 = scmp.ne.s32.totalorder %s81, %s95
      %p97 = scmp.eq.s32.totalorder %s29, 0
      %p98 = por %p96, %p97
      %s100 = sadd.s32 %s99, 1
      %p103 = scmp.eq.s32.totalorder %s23, 1
      %p104 = scmp.ne.s32.totalorder %s99, %s101
      %p105 = scmp.eq.s32.totalorder %s23, 0
      %p106 = por %p104, %p105
      %p107 = scmp.ne.s32.totalorder %s99, %s101
      %p108 = scmp.eq.s32.totalorder %s28, 1
      %p109 = por %p107, %p108
      %p110 = scmp.ne.s32.totalorder %s101, %s102
      %p111 = scmp.eq.s32.totalorder %s28, 0
      %p112 = por %p110, %p111
      %p113 = scmp.ne.s32.totalorder %s101, %s102
      %p114 = scmp.eq.s32.totalorder %s29, 1
      %p115 = por %p113, %p114
      %p117 = scmp.ne.s32.totalorder %s102, %s116
      %p118 = scmp.eq.s32.totalorder %s29, 0
      %p119 = por %p117, %p118
      %s121 = sadd.s32 %s120, 1
      %p124 = scmp.eq.s32.totalorder %s23, 1
      %p125 = scmp.ne.s32.totalorder %s120, %s122
      %p126 = scmp.eq.s32.totalorder %s23, 0
      %p127 = por %p125, %p126
      %p128 = scmp.ne.s32.totalorder %s120, %s122
      %p129 = scmp.eq.s32.totalorder %s28, 1
      %p130 = por %p128, %p129
      %p131 = scmp.ne.s32.totalorder %s122, %s123
      %p132 = scmp.eq.s32.totalorder %s28, 0
      %p133 = por %p131, %p132
      %p134 = scmp.ne.s32.totalorder %s122, %s123
      %p135 = scmp.eq.s32.totalorder %s29, 1
      %p136 = por %p134, %p135
      %p138 = scmp.ne.s32.totalorder %s123, %s137
      %p139 = scmp.eq.s32.totalorder %s29, 0
      %p140 = por %p138, %p139
      %s142 = sadd.s32 %s141, 1
      %p145 = scmp.eq.s32.totalorder %s23, 1
      %p146 = scmp.ne.s32.totalorder %s141, %s143
      %p147 = scmp.eq.s32.totalorder %s23, 0
      %p148 = por %p146, %p147
      %p149 = scmp.ne.s32.totalorder %s141, %s143
      %p150 = scmp.eq.s32.totalorder %s28, 1
      %p151 = por %p149, %p150
      %p152 = scmp.ne.s32.totalorder %s143, %s144
      %p153 = scmp.eq.s32.totalorder %s28, 0
      %p154 = por %p152, %p153
      %p155 = scmp.ne.s32.totalorder %s143, %s144
      %p156 = scmp.eq.s32.totalorder %s29, 1
      %p157 = por %p155, %p156
      %p159 = scmp.ne.s32.totalorder %s144, %s158
      %p160 = scmp.eq.s32.totalorder %s29, 0
      %p161 = por %p159, %p160
      %s163 = sadd.s32 %s162, 1
      %p166 = scmp.eq.s32.totalorder %s23, 1
      %p167 = scmp.ne.s32.totalorder %s162, %s164
      %p168 = scmp.eq.s32.totalorder %s23, 0
      %p169 = por %p167, %p168
      %p170 = scmp.ne.s32.totalorder %s162, %s164
      %p171 = scmp.eq.s32.totalorder %s28, 1
      %p172 = por %p170, %p171
      %p173 = scmp.ne.s32.totalorder %s164, %s165
      %p174 = scmp.eq.s32.totalorder %s28, 0
      %p175 = por %p173, %p174
      %p176 = scmp.ne.s32.totalorder %s164, %s165
      %p177 = scmp.eq.s32.totalorder %s29, 1
      %p178 = por %p176, %p177
      %p180 = scmp.ne.s32.totalorder %s165, %s179
      %p181 = scmp.eq.s32.totalorder %s29, 0
      %p182 = por %p180, %p181
      %s184 = sadd.s32 %s183, 1
      %p187 = scmp.eq.s32.totalorder %s23, 1
      %p188 = scmp.ne.s32.totalorder %s183, %s185
      %p189 = scmp.eq.s32.totalorder %s23, 0
      %p190 = por %p188, %p189
      %p191 = scmp.ne.s32.totalorder %s183, %s185
      %p192 = scmp.eq.s32.totalorder %s28, 1
      %p193 = por %p191, %p192
      %p194 = scmp.ne.s32.totalorder %s185, %s186
      %p195 = scmp.eq.s32.totalorder %s28, 0
      %p196 = por %p194, %p195
      %p197 = scmp.ne.s32.totalorder %s185, %s186
      %p198 = scmp.eq.s32.totalorder %s29, 1
      %p199 = por %p197, %p198
      %p201 = scmp.ne.s32.totalorder %s186, %s200
      %p202 = scmp.eq.s32.totalorder %s29, 0
      %p203 = por %p201, %p202
      %s205 = sadd.s32 %s204, 1
      %p208 = scmp.eq.s32.totalorder %s23, 1
      %p209 = scmp.ne.s32.totalorder %s204, %s206
      %p210 = scmp.eq.s32.totalorder %s23, 0
      %p211 = por %p209, %p210
      %p212 = scmp.ne.s32.totalorder %s204, %s206
      %p213 = scmp.eq.s32.totalorder %s28, 1
      %p214 = por %p212, %p213
      %p215 = scmp.ne.s32.totalorder %s206, %s207
      %p216 = scmp.eq.s32.totalorder %s28, 0
      %p217 = por %p215, %p216
      %p218 = scmp.ne.s32.totalorder %s206, %s207
      %p219 = scmp.eq.s32.totalorder %s29, 1
      %p220 = por %p218, %p219
      %p222 = scmp.ne.s32.totalorder %s207, %s221
      %p223 = scmp.eq.s32.totalorder %s29, 0
      %p224 = por %p222, %p223
      %s225 = ssub.s32 %s23, %s30
      %p226 = scmp.eq.s32.totalorder %s225, 0
      %s228 = sadd.s32 %s227, 1
      %s229 = scalar_select %p226, %s227, %s228
      %p232 = pneg %p226
      %p233 = scmp.eq.s32.totalorder %s23, 1
      %p234 = por %p232, %p233
      %p235 = scmp.ne.s32.totalorder %s227, %s230
      %p236 = scmp.eq.s32.totalorder %s23, 0
      %p237 = por %p235, %p236
      %p238 = scmp.ne.s32.totalorder %s227, %s230
      %p239 = scmp.eq.s32.totalorder %s28, 1
      %p240 = por %p238, %p239
      %p241 = scmp.ne.s32.totalorder %s230, %s231
      %p242 = scmp.eq.s32.totalorder %s28, 0
      %p243 = por %p241, %p242
      %p244 = scmp.ne.s32.totalorder %s230, %s231
      %p245 = scmp.eq.s32.totalorder %s29, 1
      %p246 = por %p244, %p245
      %p248 = scmp.ne.s32.totalorder %s231, %s247
      %p249 = scmp.eq.s32.totalorder %s29, 0
      %p250 = por %p248, %p249
      %p251 = scmp.le.s32.totalorder 1, %s23
      %p252 = scmp.lt.s32.totalorder %s23, 3
      %p253 = pnand %p251, %p252
      %p254 = pneg %p253
      // Predicated region
      $region9: #{tpu_custom_call.1} parent=5 // pred_check
        _
      $region10: #{tpu_custom_call.1} parent=5 // pred_check_branch
        %256 = sbr.rel (%p253) target = $region12
      $region11: #{tpu_custom_call.1} parent=5 // pred_region
        %s257 = ssub.s32 %s23, 1
        // Predicated region
        $region13: #{tpu_custom_call.1} parent=11 // pred_check
          %p258 = pneg %p70
        $region14: #{tpu_custom_call.1} parent=11 // pred_check_branch
          %260 = sbr.rel (%p258) target = $region16
        $region15: #{tpu_custom_call.1} parent=11 // pred_region
          %s262 = ssub.s32 1024, 1024
          %263 = vsyncadd [#allocation6], %s262
          %s264 = sshll.u32 [#allocation5], 4
          %s265 = int_to_ptr.vmem [resolvable:$true] %s264
          %270 = dma.hbm_to_vmem [thread:$0]  %s1, 1024, %s265, [#allocation6], 64, 64, 4
        $region16: #{tpu_custom_call.1} parent=11 // pred_fallthru
          _
        // Predicated region
        $region17: #{tpu_custom_call.1} parent=11 // pred_check
          %p271 = pneg %p91
        $region18: #{tpu_custom_call.1} parent=11 // pred_check_branch
          %273 = sbr.rel (%p271) target = $region20
        $region19: #{tpu_custom_call.1} parent=11 // pred_region
          _
        $region20: #{tpu_custom_call.1} parent=11 // pred_fallthru
          _
        // Predicated region
        $region21: #{tpu_custom_call.1} parent=11 // pred_check
          %p274 = pneg %p112
        $region22: #{tpu_custom_call.1} parent=11 // pred_check_branch
          %276 = sbr.rel (%p274) target = $region24
        $region23: #{tpu_custom_call.1} parent=11 // pred_region
          %s278 = ssub.s32 1024, 1024
          %279 = vsyncadd [#allocation6], %s278
          %s280 = sshll.u32 [#allocation7], 4
          %s281 = int_to_ptr.vmem [resolvable:$true] %s280
          %286 = dma.hbm_to_vmem [thread:$0]  %s3, 1024, %s281, [#allocation6], 64, 64, 4
        $region24: #{tpu_custom_call.1} parent=11 // pred_fallthru
          _
        // Predicated region
        $region25: #{tpu_custom_call.1} parent=11 // pred_check
          %p287 = pneg %p133
        $region26: #{tpu_custom_call.1} parent=11 // pred_check_branch
          %289 = sbr.rel (%p287) target = $region28
        $region27: #{tpu_custom_call.1} parent=11 // pred_region
          _
        $region28: #{tpu_custom_call.1} parent=11 // pred_fallthru
          _
        // Predicated region
        $region29: #{tpu_custom_call.1} parent=11 // pred_check
          %p290 = pneg %p154
        $region30: #{tpu_custom_call.1} parent=11 // pred_check_branch
          %292 = sbr.rel (%p290) target = $region32
        $region31: #{tpu_custom_call.1} parent=11 // pred_region
          %s294 = ssub.s32 1024, 1024
          %295 = vsyncadd [#allocation9], %s294
          %s296 = sshll.u32 [#allocation8], 4
          %s297 = int_to_ptr.vmem [resolvable:$true] %s296
          %302 = dma.hbm_to_vmem [thread:$0]  %s5, 1024, %s297, [#allocation9], 64, 64, 4
        $region32: #{tpu_custom_call.1} parent=11 // pred_fallthru
          _
        // Predicated region
        $region33: #{tpu_custom_call.1} parent=11 // pred_check
          %p303 = pneg %p175
        $region34: #{tpu_custom_call.1} parent=11 // pred_check_branch
          %305 = sbr.rel (%p303) target = $region36
        $region35: #{tpu_custom_call.1} parent=11 // pred_region
          _
        $region36: #{tpu_custom_call.1} parent=11 // pred_fallthru
          _
        // Predicated region
        $region37: #{tpu_custom_call.1} parent=11 // pred_check
          %p306 = pneg %p196
        $region38: #{tpu_custom_call.1} parent=11 // pred_check_branch
          %308 = sbr.rel (%p306) target = $region40
        $region39: #{tpu_custom_call.1} parent=11 // pred_region
          %s310 = ssub.s32 1024, 1024
          %311 = vsyncadd [#allocation9], %s310
          %s312 = sshll.u32 [#allocation10], 4
          %s313 = int_to_ptr.vmem [resolvable:$true] %s312
          %318 = dma.hbm_to_vmem [thread:$0]  %s7, 1024, %s313, [#allocation9], 64, 64, 4
        $region40: #{tpu_custom_call.1} parent=11 // pred_fallthru
          _
        // Predicated region
        $region41: #{tpu_custom_call.1} parent=11 // pred_check
          %p319 = pneg %p217
        $region42: #{tpu_custom_call.1} parent=11 // pred_check_branch
          %321 = sbr.rel (%p319) target = $region44
        $region43: #{tpu_custom_call.1} parent=11 // pred_region
          _
        $region44: #{tpu_custom_call.1} parent=11 // pred_fallthru
          _
      $region12: #{tpu_custom_call.1} parent=5 // pred_fallthru
        _
      %p322 = scmp.lt.s32.totalorder %s23, 2
      // Predicated region
      $region45: #{tpu_custom_call.1} parent=5 // pred_check
        %p323 = pneg %p322
      $region46: #{tpu_custom_call.1} parent=5 // pred_check_branch
        %325 = sbr.rel (%p323) target = $region48
      $region47: #{tpu_custom_call.1} parent=5 // pred_region
        // Predicated region
        $region49: #{tpu_custom_call.1} parent=47 // pred_check
          %p326 = pneg %p43
        $region50: #{tpu_custom_call.1} parent=47 // pred_check_branch
          %328 = sbr.rel (%p326) target = $region52
        $region51: #{tpu_custom_call.1} parent=47 // pred_region
          %s329 = sand.u32 %s33, 1
          %s330 = scalar_lea.sflag [#allocation3], %s329
          %s331 = sand.u32 %s33, 1
          %s332 = smul.addr %s331, 128
          %s333 = scalar_lea.vmem [#allocation2], %s332
          %s334 = smul.u32 32, %s23
          %s336 = ssub.s32 2048, 2048
          %337 = vsyncadd %s330, %s336
          %s338 = smul.addr %s334, 64
          %s339 = scalar_lea.hbm %s0, %s338
          %s340 = sshll.u32 %s333, 4
          %s341 = int_to_ptr.vmem [resolvable:$true] %s340
          %346 = dma.hbm_to_vmem [thread:$0]  %s339, 2048, %s341, %s330, 64, 64, 4
        $region52: #{tpu_custom_call.1} parent=47 // pred_fallthru
          _
      $region48: #{tpu_custom_call.1} parent=5 // pred_fallthru
        _
      %p347 = scmp.le.s32.totalorder 1, %s23
      %p348 = scmp.lt.s32.totalorder %s23, 3
      %p349 = pnand %p347, %p348
      %p350 = pneg %p349
      // Predicated region
      $region53: #{tpu_custom_call.1} parent=5 // pred_check
        _
      $region54: #{tpu_custom_call.1} parent=5 // pred_check_branch
        %352 = sbr.rel (%p349) target = $region56
      $region55: #{tpu_custom_call.1} parent=5 // pred_region
        %s353 = ssub.s32 %s23, 1
        %s354 = sand.u32 %s36, 1
        %s355 = scalar_lea.sflag [#allocation3], %s354
        %s356 = sand.u32 %s36, 1
        %s357 = smul.addr %s356, 128
        %s358 = scalar_lea.vmem [#allocation2], %s357
        // Predicated region
        $region57: #{tpu_custom_call.1} parent=55 // pred_check
          %p359 = pneg %p49
        $region58: #{tpu_custom_call.1} parent=55 // pred_check_branch
          %361 = sbr.rel (%p359) target = $region60
        $region59: #{tpu_custom_call.1} parent=55 // pred_region
          %362 = dma.done %s355, 2048
        $region60: #{tpu_custom_call.1} parent=55 // pred_fallthru
          _
        // Predicated region
        $region61: #{tpu_custom_call.1} parent=55 // pred_check
          %p363 = pneg %p70
        $region62: #{tpu_custom_call.1} parent=55 // pred_check_branch
          %365 = sbr.rel (%p363) target = $region64
        $region63: #{tpu_custom_call.1} parent=55 // pred_region
          %366 = dma.done [#allocation6], 1024
        $region64: #{tpu_custom_call.1} parent=55 // pred_fallthru
          _
        // Predicated region
        $region65: #{tpu_custom_call.1} parent=55 // pred_check
          %p367 = pneg %p112
        $region66: #{tpu_custom_call.1} parent=55 // pred_check_branch
          %369 = sbr.rel (%p367) target = $region68
        $region67: #{tpu_custom_call.1} parent=55 // pred_region
          %370 = dma.done [#allocation6], 1024
        $region68: #{tpu_custom_call.1} parent=55 // pred_fallthru
          _
        // Predicated region
        $region69: #{tpu_custom_call.1} parent=55 // pred_check
          %p371 = pneg %p154
        $region70: #{tpu_custom_call.1} parent=55 // pred_check_branch
          %373 = sbr.rel (%p371) target = $region72
        $region71: #{tpu_custom_call.1} parent=55 // pred_region
          %374 = dma.done [#allocation9], 1024
        $region72: #{tpu_custom_call.1} parent=55 // pred_fallthru
          _
        // Predicated region
        $region73: #{tpu_custom_call.1} parent=55 // pred_check
          %p375 = pneg %p196
        $region74: #{tpu_custom_call.1} parent=55 // pred_check_branch
          %377 = sbr.rel (%p375) target = $region76
        $region75: #{tpu_custom_call.1} parent=55 // pred_region
          %378 = dma.done [#allocation9], 1024
        $region76: #{tpu_custom_call.1} parent=55 // pred_fallthru
          _
        %s379 = sand.u32 %s36, 1
        %s380 = scalar_lea.sflag [#allocation3], %s379
        %s381 = sand.u32 %s36, 1
        %s382 = smul.addr %s381, 128
        %s383 = scalar_lea.vmem [#allocation2], %s382
        %p384 = pneg %p49
        %p385 = pneg %p46
        %p386 = pneg %p70
        %p387 = pneg %p67
        %p388 = pneg %p91
        %p389 = pneg %p88
        %p390 = pneg %p112
        %p391 = pneg %p109
        %p392 = pneg %p133
        %p393 = pneg %p130
        %p394 = pneg %p154
        %p395 = pneg %p151
        %p396 = pneg %p175
        %p397 = pneg %p172
        %p398 = pneg %p196
        %p399 = pneg %p193
        %p400 = pneg %p217
        %p401 = pneg %p214
        %p402 = pneg %p243
        %p403 = pneg %p240
        %s404 = sand.u32 %s230, 1
        %s405 = scalar_lea.sflag [#allocation4], %s404
        %s406 = sand.u32 %s230, 1
        %s407 = smul.addr %s406, 256
        %s408 = scalar_lea.vmem [#allocation11], %s407
        %s409 = smul.u32 32, %s28
        %s410 = smul.u32 32, %s28
        %v412 = vld [vmem:[%s358] sm:$0xf]
        %v413 = vld [vmem:[%s358 + $0x4] sm:$0xf]
        %v414 = vld [vmem:[%s358 + $0x8] sm:$0xf]
        %v415 = vld [vmem:[%s358 + $0xc] sm:$0xf]
        %v416 = vld [vmem:[%s358 + $0x10] sm:$0xf]
        %v417 = vld [vmem:[%s358 + $0x14] sm:$0xf]
        %v418 = vld [vmem:[%s358 + $0x18] sm:$0xf]
        %v419 = vld [vmem:[%s358 + $0x1c] sm:$0xf]
        %v420 = vld [vmem:[%s358 + $0x20] sm:$0xf]
        %v421 = vld [vmem:[%s358 + $0x24] sm:$0xf]
        %v422 = vld [vmem:[%s358 + $0x28] sm:$0xf]
        %v423 = vld [vmem:[%s358 + $0x2c] sm:$0xf]
        %v424 = vld [vmem:[%s358 + $0x30] sm:$0xf]
        %v425 = vld [vmem:[%s358 + $0x34] sm:$0xf]
        %v426 = vld [vmem:[%s358 + $0x38] sm:$0xf]
        %v427 = vld [vmem:[%s358 + $0x3c] sm:$0xf]
        %v428 = vld [vmem:[%s358 + $0x40] sm:$0xf]
        %v429 = vld [vmem:[%s358 + $0x44] sm:$0xf]
        %v430 = vld [vmem:[%s358 + $0x48] sm:$0xf]
        %v431 = vld [vmem:[%s358 + $0x4c] sm:$0xf]
        %v432 = vld [vmem:[%s358 + $0x50] sm:$0xf]
        %v433 = vld [vmem:[%s358 + $0x54] sm:$0xf]
        %v434 = vld [vmem:[%s358 + $0x58] sm:$0xf]
        %v435 = vld [vmem:[%s358 + $0x5c] sm:$0xf]
        %v436 = vld [vmem:[%s358 + $0x60] sm:$0xf]
        %v437 = vld [vmem:[%s358 + $0x64] sm:$0xf]
        %v438 = vld [vmem:[%s358 + $0x68] sm:$0xf]
        %v439 = vld [vmem:[%s358 + $0x6c] sm:$0xf]
        %v440 = vld [vmem:[%s358 + $0x70] sm:$0xf]
        %v441 = vld [vmem:[%s358 + $0x74] sm:$0xf]
        %v442 = vld [vmem:[%s358 + $0x78] sm:$0xf]
        %v443 = vld [vmem:[%s358 + $0x7c] sm:$0xf]
        %v444 = vld [vmem:[#allocation5] sm:$0xf]
        %v445 = vld [vmem:[#allocation5 + $0x4] sm:$0xf]
        %v446 = vld [vmem:[#allocation5 + $0x8] sm:$0xf]
        %v447 = vld [vmem:[#allocation5 + $0xc] sm:$0xf]
        %v448 = vld [vmem:[#allocation5 + $0x10] sm:$0xf]
        %v449 = vld [vmem:[#allocation5 + $0x14] sm:$0xf]
        %v450 = vld [vmem:[#allocation5 + $0x18] sm:$0xf]
        %v451 = vld [vmem:[#allocation5 + $0x1c] sm:$0xf]
        %v452 = vld [vmem:[#allocation5 + $0x20] sm:$0xf]
        %v453 = vld [vmem:[#allocation5 + $0x24] sm:$0xf]
        %v454 = vld [vmem:[#allocation5 + $0x28] sm:$0xf]
        %v455 = vld [vmem:[#allocation5 + $0x2c] sm:$0xf]
        %v456 = vld [vmem:[#allocation5 + $0x30] sm:$0xf]
        %v457 = vld [vmem:[#allocation5 + $0x34] sm:$0xf]
        %v458 = vld [vmem:[#allocation5 + $0x38] sm:$0xf]
        %v459 = vld [vmem:[#allocation5 + $0x3c] sm:$0xf]
        %v460 = vld [vmem:[%s2] sm:$0x1]
        %v462 = vlaneseq
        %v463 = vshrl.u32 %v462, 7
        %v464 = vsub.s32 0, %v463
        %v465 = vrot.slane %v460, %v464
        %v499 = vunpack.c.l.b16 %v412
        %v500 = vunpack.c.l.b16 %v413
        %v501 = vunpack.c.l.b16 %v414
        %v502 = vunpack.c.l.b16 %v415
        %v503 = vunpack.c.l.b16 %v416
        %v504 = vunpack.c.l.b16 %v417
        %v505 = vunpack.c.l.b16 %v418
        %v506 = vunpack.c.l.b16 %v419
        %v507 = vunpack.c.l.b16 %v420
        %v508 = vunpack.c.l.b16 %v421
        %v509 = vunpack.c.l.b16 %v422
        %v510 = vunpack.c.l.b16 %v423
        %v511 = vunpack.c.l.b16 %v424
        %v512 = vunpack.c.l.b16 %v425
        %v513 = vunpack.c.l.b16 %v426
        %v514 = vunpack.c.l.b16 %v427
        %v515 = vunpack.c.l.b16 %v428
        %v516 = vunpack.c.l.b16 %v429
        %v517 = vunpack.c.l.b16 %v430
        %v518 = vunpack.c.l.b16 %v431
        %v519 = vunpack.c.l.b16 %v432
        %v520 = vunpack.c.l.b16 %v433
        %v521 = vunpack.c.l.b16 %v434
        %v522 = vunpack.c.l.b16 %v435
        %v523 = vunpack.c.l.b16 %v436
        %v524 = vunpack.c.l.b16 %v437
        %v525 = vunpack.c.l.b16 %v438
        %v526 = vunpack.c.l.b16 %v439
        %v527 = vunpack.c.l.b16 %v440
        %v528 = vunpack.c.l.b16 %v441
        %v529 = vunpack.c.l.b16 %v442
        %v530 = vunpack.c.l.b16 %v443
        %v531 = vpack.c.b16 %v500, %v499
        %v532 = vpack.c.b16 %v502, %v501
        %v533 = vpack.c.b16 %v504, %v503
        %v534 = vpack.c.b16 %v506, %v505
        %v535 = vpack.c.b16 %v508, %v507
        %v536 = vpack.c.b16 %v510, %v509
        %v537 = vpack.c.b16 %v512, %v511
        %v538 = vpack.c.b16 %v514, %v513
        %v539 = vpack.c.b16 %v516, %v515
        %v540 = vpack.c.b16 %v518, %v517
        %v541 = vpack.c.b16 %v520, %v519
        %v542 = vpack.c.b16 %v522, %v521
        %v543 = vpack.c.b16 %v524, %v523
        %v544 = vpack.c.b16 %v526, %v525
        %v545 = vpack.c.b16 %v528, %v527
        %v546 = vpack.c.b16 %v530, %v529
        %v579 = vunpack.c.l.b16 %v444
        %v580 = vunpack.c.l.b16 %v445
        %v581 = vunpack.c.l.b16 %v446
        %v582 = vunpack.c.l.b16 %v447
        %v583 = vunpack.c.l.b16 %v448
        %v584 = vunpack.c.l.b16 %v449
        %v585 = vunpack.c.l.b16 %v450
        %v586 = vunpack.c.l.b16 %v451
        %v587 = vunpack.c.l.b16 %v452
        %v588 = vunpack.c.l.b16 %v453
        %v589 = vunpack.c.l.b16 %v454
        %v590 = vunpack.c.l.b16 %v455
        %v591 = vunpack.c.l.b16 %v456
        %v592 = vunpack.c.l.b16 %v457
        %v593 = vunpack.c.l.b16 %v458
        %v594 = vunpack.c.l.b16 %v459
        %v595 = vpack.c.b16 %v580, %v579
        %v596 = vpack.c.b16 %v582, %v581
        %v597 = vpack.c.b16 %v584, %v583
        %v598 = vpack.c.b16 %v586, %v585
        %v599 = vpack.c.b16 %v588, %v587
        %v600 = vpack.c.b16 %v590, %v589
        %v601 = vpack.c.b16 %v592, %v591
        %v602 = vpack.c.b16 %v594, %v593
        %611 = vmatprep.subr.bf16.mxu0 0
        %612 = vmatpush1.bf16.msra.mxu0 %v602
        %613 = vmatprep.subr.bf16.mxu0 0
        %614 = vmatpush1.bf16.msra.mxu0 %v601
        %615 = vmatprep.subr.bf16.mxu0 0
        %616 = vmatpush1.bf16.msra.mxu0 %v600
        %617 = vmatprep.subr.bf16.mxu0 0
        %618 = vmatpush1.bf16.msra.mxu0 %v599
        %619 = vmatprep.subr.bf16.mxu0 0
        %620 = vmatpush1.bf16.msra.mxu0 %v598
        %621 = vmatprep.subr.bf16.mxu0 0
        %622 = vmatpush1.bf16.msra.mxu0 %v597
        %623 = vmatprep.subr.bf16.mxu0 0
        %624 = vmatpush1.bf16.msra.mxu0 %v596
        %625 = vmatprep.subr.bf16.mxu0 0
        %626 = vmatpush1.bf16.msra.mxu0 %v595
        %627 = vmatprep.subr.bf16.mxu0 0
        %628 = vmatpush2.bf16.msra.mxu0 0
        %629 = vmatprep.subr.bf16.mxu0 0
        %630 = vmatpush2.bf16.msra.mxu0 0
        %631 = vmatprep.subr.bf16.mxu0 0
        %632 = vmatpush2.bf16.msra.mxu0 0
        %633 = vmatprep.subr.bf16.mxu0 0
        %634 = vmatpush2.bf16.msra.mxu0 0
        %635 = vmatprep.subr.bf16.mxu0 0
        %636 = vmatpush2.bf16.msra.mxu0 0
        %637 = vmatprep.subr.bf16.mxu0 0
        %638 = vmatpush2.bf16.msra.mxu0 0
        %639 = vmatprep.subr.bf16.mxu0 0
        %640 = vmatpush2.bf16.msra.mxu0 0
        %641 = vmatprep.subr.bf16.mxu0 0
        %642 = vmatpush2.bf16.msra.mxu0 0
        %643 = vmatprep.mubr.bf16.mxu0 0
        %644 = vmatmul.mubr.bf16.gmra.mxu0 %v531
        %v645 = vpop.f32.mrf.mxu0
        %v646 = vadd.f32 %v465, %v645
        %v647 = vpop.f32.mrf.mxu0
        %v648 = vpop.f32.mrf.mxu0
        %v649 = vadd.f32 %v465, %v648
        %v650 = vpop.f32.mrf.mxu0
        %651 = vmatprep.mubr.bf16.mxu0 0
        %652 = vmatmul.mubr.bf16.gmra.mxu0 %v532
        %v653 = vpop.f32.mrf.mxu0
        %v654 = vadd.f32 %v465, %v653
        %v655 = vpop.f32.mrf.mxu0
        %v656 = vpop.f32.mrf.mxu0
        %v657 = vadd.f32 %v465, %v656
        %v658 = vpop.f32.mrf.mxu0
        %659 = vmatprep.mubr.bf16.mxu0 0
        %660 = vmatmul.mubr.bf16.gmra.mxu0 %v533
        %v661 = vpop.f32.mrf.mxu0
        %v662 = vadd.f32 %v465, %v661
        %v663 = vpop.f32.mrf.mxu0
        %v664 = vpop.f32.mrf.mxu0
        %v665 = vadd.f32 %v465, %v664
        %v666 = vpop.f32.mrf.mxu0
        %667 = vmatprep.mubr.bf16.mxu0 0
        %668 = vmatmul.mubr.bf16.gmra.mxu0 %v534
        %v669 = vpop.f32.mrf.mxu0
        %v670 = vadd.f32 %v465, %v669
        %v671 = vpop.f32.mrf.mxu0
        %v672 = vpop.f32.mrf.mxu0
        %v673 = vadd.f32 %v465, %v672
        %v674 = vpop.f32.mrf.mxu0
        %675 = vmatprep.mubr.bf16.mxu0 0
        %676 = vmatmul.mubr.bf16.gmra.mxu0 %v535
        %v677 = vpop.f32.mrf.mxu0
        %v678 = vadd.f32 %v465, %v677
        %v679 = vpop.f32.mrf.mxu0
        %v680 = vpop.f32.mrf.mxu0
        %v681 = vadd.f32 %v465, %v680
        %v682 = vpop.f32.mrf.mxu0
        %683 = vmatprep.mubr.bf16.mxu0 0
        %684 = vmatmul.mubr.bf16.gmra.mxu0 %v536
        %v685 = vpop.f32.mrf.mxu0
        %v686 = vadd.f32 %v465, %v685
        %v687 = vpop.f32.mrf.mxu0
        %v688 = vpop.f32.mrf.mxu0
        %v689 = vadd.f32 %v465, %v688
        %v690 = vpop.f32.mrf.mxu0
        %691 = vmatprep.mubr.bf16.mxu0 0
        %692 = vmatmul.mubr.bf16.gmra.mxu0 %v537
        %v693 = vpop.f32.mrf.mxu0
        %v694 = vadd.f32 %v465, %v693
        %v695 = vpop.f32.mrf.mxu0
        %v696 = vpop.f32.mrf.mxu0
        %v697 = vadd.f32 %v465, %v696
        %v698 = vpop.f32.mrf.mxu0
        %699 = vmatprep.mubr.bf16.mxu0 0
        %700 = vmatmul.mubr.bf16.gmra.mxu0 %v538
        %v701 = vpop.f32.mrf.mxu0
        %v702 = vadd.f32 %v465, %v701
        %v703 = vpop.f32.mrf.mxu0
        %v704 = vpop.f32.mrf.mxu0
        %v705 = vadd.f32 %v465, %v704
        %v706 = vpop.f32.mrf.mxu0
        %707 = vmatprep.mubr.bf16.mxu0 0
        %708 = vmatmul.mubr.bf16.gmra.mxu0 %v539
        %v709 = vpop.f32.mrf.mxu0
        %v710 = vadd.f32 %v465, %v709
        %v711 = vpop.f32.mrf.mxu0
        %v712 = vpop.f32.mrf.mxu0
        %v713 = vadd.f32 %v465, %v712
        %v714 = vpop.f32.mrf.mxu0
        %715 = vmatprep.mubr.bf16.mxu0 0
        %716 = vmatmul.mubr.bf16.gmra.mxu0 %v540
        %v717 = vpop.f32.mrf.mxu0
        %v718 = vadd.f32 %v465, %v717
        %v719 = vpop.f32.mrf.mxu0
        %v720 = vpop.f32.mrf.mxu0
        %v721 = vadd.f32 %v465, %v720
        %v722 = vpop.f32.mrf.mxu0
        %723 = vmatprep.mubr.bf16.mxu0 0
        %724 = vmatmul.mubr.bf16.gmra.mxu0 %v541
        %v725 = vpop.f32.mrf.mxu0
        %v726 = vadd.f32 %v465, %v725
        %v727 = vpop.f32.mrf.mxu0
        %v728 = vpop.f32.mrf.mxu0
        %v729 = vadd.f32 %v465, %v728
        %v730 = vpop.f32.mrf.mxu0
        %731 = vmatprep.mubr.bf16.mxu0 0
        %732 = vmatmul.mubr.bf16.gmra.mxu0 %v542
        %v733 = vpop.f32.mrf.mxu0
        %v734 = vadd.f32 %v465, %v733
        %v735 = vpop.f32.mrf.mxu0
        %v736 = vpop.f32.mrf.mxu0
        %v737 = vadd.f32 %v465, %v736
        %v738 = vpop.f32.mrf.mxu0
        %739 = vmatprep.mubr.bf16.mxu0 0
        %740 = vmatmul.mubr.bf16.gmra.mxu0 %v543
        %v741 = vpop.f32.mrf.mxu0
        %v742 = vadd.f32 %v465, %v741
        %v743 = vpop.f32.mrf.mxu0
        %v744 = vpop.f32.mrf.mxu0
        %v745 = vadd.f32 %v465, %v744
        %v746 = vpop.f32.mrf.mxu0
        %747 = vmatprep.mubr.bf16.mxu0 0
        %748 = vmatmul.mubr.bf16.gmra.mxu0 %v544
        %v749 = vpop.f32.mrf.mxu0
        %v750 = vadd.f32 %v465, %v749
        %v751 = vpop.f32.mrf.mxu0
        %v752 = vpop.f32.mrf.mxu0
        %v753 = vadd.f32 %v465, %v752
        %v754 = vpop.f32.mrf.mxu0
        %755 = vmatprep.mubr.bf16.mxu0 0
        %756 = vmatmul.mubr.bf16.gmra.mxu0 %v545
        %v757 = vpop.f32.mrf.mxu0
        %v758 = vadd.f32 %v465, %v757
        %v759 = vpop.f32.mrf.mxu0
        %v760 = vpop.f32.mrf.mxu0
        %v761 = vadd.f32 %v465, %v760
        %v762 = vpop.f32.mrf.mxu0
        %763 = vmatprep.mubr.bf16.mxu0 0
        %764 = vmatmul.mubr.bf16.gmra.mxu0 %v546
        %v765 = vpop.f32.mrf.mxu0
        %v766 = vadd.f32 %v465, %v765
        %v767 = vpop.f32.mrf.mxu0
        %v768 = vpop.f32.mrf.mxu0
        %v769 = vadd.f32 %v465, %v768
        %v770 = vpop.f32.mrf.mxu0
        %771 = vdwg.mxu0
        %vm772 = vcmp.ge.f32.partialorder %v646, 0.0
        %vm773 = vcmp.ge.f32.partialorder %v649, 0.0
        %vm774 = vcmp.ge.f32.partialorder %v654, 0.0
        %vm775 = vcmp.ge.f32.partialorder %v657, 0.0
        %vm776 = vcmp.ge.f32.partialorder %v662, 0.0
        %vm777 = vcmp.ge.f32.partialorder %v665, 0.0
        %vm778 = vcmp.ge.f32.partialorder %v670, 0.0
        %vm779 = vcmp.ge.f32.partialorder %v673, 0.0
        %vm780 = vcmp.ge.f32.partialorder %v678, 0.0
        %vm781 = vcmp.ge.f32.partialorder %v681, 0.0
        %vm782 = vcmp.ge.f32.partialorder %v686, 0.0
        %vm783 = vcmp.ge.f32.partialorder %v689, 0.0
        %vm784 = vcmp.ge.f32.partialorder %v694, 0.0
        %vm785 = vcmp.ge.f32.partialorder %v697, 0.0
        %vm786 = vcmp.ge.f32.partialorder %v702, 0.0
        %vm787 = vcmp.ge.f32.partialorder %v705, 0.0
        %vm788 = vcmp.ge.f32.partialorder %v710, 0.0
        %vm789 = vcmp.ge.f32.partialorder %v713, 0.0
        %vm790 = vcmp.ge.f32.partialorder %v718, 0.0
        %vm791 = vcmp.ge.f32.partialorder %v721, 0.0
        %vm792 = vcmp.ge.f32.partialorder %v726, 0.0
        %vm793 = vcmp.ge.f32.partialorder %v729, 0.0
        %vm794 = vcmp.ge.f32.partialorder %v734, 0.0
        %vm795 = vcmp.ge.f32.partialorder %v737, 0.0
        %vm796 = vcmp.ge.f32.partialorder %v742, 0.0
        %vm797 = vcmp.ge.f32.partialorder %v745, 0.0
        %vm798 = vcmp.ge.f32.partialorder %v750, 0.0
        %vm799 = vcmp.ge.f32.partialorder %v753, 0.0
        %vm800 = vcmp.ge.f32.partialorder %v758, 0.0
        %vm801 = vcmp.ge.f32.partialorder %v761, 0.0
        %vm802 = vcmp.ge.f32.partialorder %v766, 0.0
        %vm803 = vcmp.ge.f32.partialorder %v769, 0.0
        %v804 = vmul.f32 %v646, 0.01
        %v805 = vmul.f32 %v649, 0.01
        %v806 = vmul.f32 %v654, 0.01
        %v807 = vmul.f32 %v657, 0.01
        %v808 = vmul.f32 %v662, 0.01
        %v809 = vmul.f32 %v665, 0.01
        %v810 = vmul.f32 %v670, 0.01
        %v811 = vmul.f32 %v673, 0.01
        %v812 = vmul.f32 %v678, 0.01
        %v813 = vmul.f32 %v681, 0.01
        %v814 = vmul.f32 %v686, 0.01
        %v815 = vmul.f32 %v689, 0.01
        %v816 = vmul.f32 %v694, 0.01
        %v817 = vmul.f32 %v697, 0.01
        %v818 = vmul.f32 %v702, 0.01
        %v819 = vmul.f32 %v705, 0.01
        %v820 = vmul.f32 %v710, 0.01
        %v821 = vmul.f32 %v713, 0.01
        %v822 = vmul.f32 %v718, 0.01
        %v823 = vmul.f32 %v721, 0.01
        %v824 = vmul.f32 %v726, 0.01
        %v825 = vmul.f32 %v729, 0.01
        %v826 = vmul.f32 %v734, 0.01
        %v827 = vmul.f32 %v737, 0.01
        %v828 = vmul.f32 %v742, 0.01
        %v829 = vmul.f32 %v745, 0.01
        %v830 = vmul.f32 %v750, 0.01
        %v831 = vmul.f32 %v753, 0.01
        %v832 = vmul.f32 %v758, 0.01
        %v833 = vmul.f32 %v761, 0.01
        %v834 = vmul.f32 %v766, 0.01
        %v835 = vmul.f32 %v769, 0.01
        %v836 = vsel %vm772, %v646, %v804
        %v837 = vsel %vm773, %v649, %v805
        %v838 = vsel %vm774, %v654, %v806
        %v839 = vsel %vm775, %v657, %v807
        %v840 = vsel %vm776, %v662, %v808
        %v841 = vsel %vm777, %v665, %v809
        %v842 = vsel %vm778, %v670, %v810
        %v843 = vsel %vm779, %v673, %v811
        %v844 = vsel %vm780, %v678, %v812
        %v845 = vsel %vm781, %v681, %v813
        %v846 = vsel %vm782, %v686, %v814
        %v847 = vsel %vm783, %v689, %v815
        %v848 = vsel %vm784, %v694, %v816
        %v849 = vsel %vm785, %v697, %v817
        %v850 = vsel %vm786, %v702, %v818
        %v851 = vsel %vm787, %v705, %v819
        %v852 = vsel %vm788, %v710, %v820
        %v853 = vsel %vm789, %v713, %v821
        %v854 = vsel %vm790, %v718, %v822
        %v855 = vsel %vm791, %v721, %v823
        %v856 = vsel %vm792, %v726, %v824
        %v857 = vsel %vm793, %v729, %v825
        %v858 = vsel %vm794, %v734, %v826
        %v859 = vsel %vm795, %v737, %v827
        %v860 = vsel %vm796, %v742, %v828
        %v861 = vsel %vm797, %v745, %v829
        %v862 = vsel %vm798, %v750, %v830
        %v863 = vsel %vm799, %v753, %v831
        %v864 = vsel %vm800, %v758, %v832
        %v865 = vsel %vm801, %v761, %v833
        %v866 = vsel %vm802, %v766, %v834
        %v867 = vsel %vm803, %v769, %v835
        %v868 = vpack.c.bf16 %v837, %v836
        %v869 = vpack.c.bf16 %v839, %v838
        %v870 = vpack.c.bf16 %v841, %v840
        %v871 = vpack.c.bf16 %v843, %v842
        %v872 = vpack.c.bf16 %v845, %v844
        %v873 = vpack.c.bf16 %v847, %v846
        %v874 = vpack.c.bf16 %v849, %v848
        %v875 = vpack.c.bf16 %v851, %v850
        %v876 = vpack.c.bf16 %v853, %v852
        %v877 = vpack.c.bf16 %v855, %v854
        %v878 = vpack.c.bf16 %v857, %v856
        %v879 = vpack.c.bf16 %v859, %v858
        %v880 = vpack.c.bf16 %v861, %v860
        %v881 = vpack.c.bf16 %v863, %v862
        %v882 = vpack.c.bf16 %v865, %v864
        %v883 = vpack.c.bf16 %v867, %v866
        %v884 = vld [vmem:[#allocation7] sm:$0xf]
        %v885 = vld [vmem:[#allocation7 + $0x4] sm:$0xf]
        %v886 = vld [vmem:[#allocation7 + $0x8] sm:$0xf]
        %v887 = vld [vmem:[#allocation7 + $0xc] sm:$0xf]
        %v888 = vld [vmem:[#allocation7 + $0x10] sm:$0xf]
        %v889 = vld [vmem:[#allocation7 + $0x14] sm:$0xf]
        %v890 = vld [vmem:[#allocation7 + $0x18] sm:$0xf]
        %v891 = vld [vmem:[#allocation7 + $0x1c] sm:$0xf]
        %v892 = vld [vmem:[#allocation7 + $0x20] sm:$0xf]
        %v893 = vld [vmem:[#allocation7 + $0x24] sm:$0xf]
        %v894 = vld [vmem:[#allocation7 + $0x28] sm:$0xf]
        %v895 = vld [vmem:[#allocation7 + $0x2c] sm:$0xf]
        %v896 = vld [vmem:[#allocation7 + $0x30] sm:$0xf]
        %v897 = vld [vmem:[#allocation7 + $0x34] sm:$0xf]
        %v898 = vld [vmem:[#allocation7 + $0x38] sm:$0xf]
        %v899 = vld [vmem:[#allocation7 + $0x3c] sm:$0xf]
        %v900 = vld [vmem:[%s4] sm:$0x1]
        %v902 = vlaneseq
        %v903 = vshrl.u32 %v902, 7
        %v904 = vsub.s32 0, %v903
        %v905 = vrot.slane %v900, %v904
        %v923 = vunpack.c.l.b16 %v884
        %v924 = vunpack.c.l.b16 %v885
        %v925 = vunpack.c.l.b16 %v886
        %v926 = vunpack.c.l.b16 %v887
        %v927 = vunpack.c.l.b16 %v888
        %v928 = vunpack.c.l.b16 %v889
        %v929 = vunpack.c.l.b16 %v890
        %v930 = vunpack.c.l.b16 %v891
        %v931 = vunpack.c.l.b16 %v892
        %v932 = vunpack.c.l.b16 %v893
        %v933 = vunpack.c.l.b16 %v894
        %v934 = vunpack.c.l.b16 %v895
        %v935 = vunpack.c.l.b16 %v896
        %v936 = vunpack.c.l.b16 %v897
        %v937 = vunpack.c.l.b16 %v898
        %v938 = vunpack.c.l.b16 %v899
        %v939 = vpack.c.b16 %v924, %v923
        %v940 = vpack.c.b16 %v926, %v925
        %v941 = vpack.c.b16 %v928, %v927
        %v942 = vpack.c.b16 %v930, %v929
        %v943 = vpack.c.b16 %v932, %v931
        %v944 = vpack.c.b16 %v934, %v933
        %v945 = vpack.c.b16 %v936, %v935
        %v946 = vpack.c.b16 %v938, %v937
        %955 = vmatprep.subr.bf16.mxu0 0
        %956 = vmatpush1.bf16.msra.mxu0 %v946
        %957 = vmatprep.subr.bf16.mxu0 0
        %958 = vmatpush1.bf16.msra.mxu0 %v945
        %959 = vmatprep.subr.bf16.mxu0 0
        %960 = vmatpush1.bf16.msra.mxu0 %v944
        %961 = vmatprep.subr.bf16.mxu0 0
        %962 = vmatpush1.bf16.msra.mxu0 %v943
        %963 = vmatprep.subr.bf16.mxu0 0
        %964 = vmatpush1.bf16.msra.mxu0 %v942
        %965 = vmatprep.subr.bf16.mxu0 0
        %966 = vmatpush1.bf16.msra.mxu0 %v941
        %967 = vmatprep.subr.bf16.mxu0 0
        %968 = vmatpush1.bf16.msra.mxu0 %v940
        %969 = vmatprep.subr.bf16.mxu0 0
        %970 = vmatpush1.bf16.msra.mxu0 %v939
        %971 = vmatprep.subr.bf16.mxu0 0
        %972 = vmatpush2.bf16.msra.mxu0 0
        %973 = vmatprep.subr.bf16.mxu0 0
        %974 = vmatpush2.bf16.msra.mxu0 0
        %975 = vmatprep.subr.bf16.mxu0 0
        %976 = vmatpush2.bf16.msra.mxu0 0
        %977 = vmatprep.subr.bf16.mxu0 0
        %978 = vmatpush2.bf16.msra.mxu0 0
        %979 = vmatprep.subr.bf16.mxu0 0
        %980 = vmatpush2.bf16.msra.mxu0 0
        %981 = vmatprep.subr.bf16.mxu0 0
        %982 = vmatpush2.bf16.msra.mxu0 0
        %983 = vmatprep.subr.bf16.mxu0 0
        %984 = vmatpush2.bf16.msra.mxu0 0
        %985 = vmatprep.subr.bf16.mxu0 0
        %986 = vmatpush2.bf16.msra.mxu0 0
        %987 = vmatprep.mubr.bf16.mxu0 0
        %988 = vmatmul.mubr.bf16.gmra.mxu0 %v868
        %v989 = vpop.f32.mrf.mxu0
        %v990 = vadd.f32 %v905, %v989
        %v991 = vpop.f32.mrf.mxu0
        %v992 = vpop.f32.mrf.mxu0
        %v993 = vadd.f32 %v905, %v992
        %v994 = vpop.f32.mrf.mxu0
        %995 = vmatprep.mubr.bf16.mxu0 0
        %996 = vmatmul.mubr.bf16.gmra.mxu0 %v869
        %v997 = vpop.f32.mrf.mxu0
        %v998 = vadd.f32 %v905, %v997
        %v999 = vpop.f32.mrf.mxu0
        %v1000 = vpop.f32.mrf.mxu0
        %v1001 = vadd.f32 %v905, %v1000
        %v1002 = vpop.f32.mrf.mxu0
        %1003 = vmatprep.mubr.bf16.mxu0 0
        %1004 = vmatmul.mubr.bf16.gmra.mxu0 %v870
        %v1005 = vpop.f32.mrf.mxu0
        %v1006 = vadd.f32 %v905, %v1005
        %v1007 = vpop.f32.mrf.mxu0
        %v1008 = vpop.f32.mrf.mxu0
        %v1009 = vadd.f32 %v905, %v1008
        %v1010 = vpop.f32.mrf.mxu0
        %1011 = vmatprep.mubr.bf16.mxu0 0
        %1012 = vmatmul.mubr.bf16.gmra.mxu0 %v871
        %v1013 = vpop.f32.mrf.mxu0
        %v1014 = vadd.f32 %v905, %v1013
        %v1015 = vpop.f32.mrf.mxu0
        %v1016 = vpop.f32.mrf.mxu0
        %v1017 = vadd.f32 %v905, %v1016
        %v1018 = vpop.f32.mrf.mxu0
        %1019 = vmatprep.mubr.bf16.mxu0 0
        %1020 = vmatmul.mubr.bf16.gmra.mxu0 %v872
        %v1021 = vpop.f32.mrf.mxu0
        %v1022 = vadd.f32 %v905, %v1021
        %v1023 = vpop.f32.mrf.mxu0
        %v1024 = vpop.f32.mrf.mxu0
        %v1025 = vadd.f32 %v905, %v1024
        %v1026 = vpop.f32.mrf.mxu0
        %1027 = vmatprep.mubr.bf16.mxu0 0
        %1028 = vmatmul.mubr.bf16.gmra.mxu0 %v873
        %v1029 = vpop.f32.mrf.mxu0
        %v1030 = vadd.f32 %v905, %v1029
        %v1031 = vpop.f32.mrf.mxu0
        %v1032 = vpop.f32.mrf.mxu0
        %v1033 = vadd.f32 %v905, %v1032
        %v1034 = vpop.f32.mrf.mxu0
        %1035 = vmatprep.mubr.bf16.mxu0 0
        %1036 = vmatmul.mubr.bf16.gmra.mxu0 %v874
        %v1037 = vpop.f32.mrf.mxu0
        %v1038 = vadd.f32 %v905, %v1037
        %v1039 = vpop.f32.mrf.mxu0
        %v1040 = vpop.f32.mrf.mxu0
        %v1041 = vadd.f32 %v905, %v1040
        %v1042 = vpop.f32.mrf.mxu0
        %1043 = vmatprep.mubr.bf16.mxu0 0
        %1044 = vmatmul.mubr.bf16.gmra.mxu0 %v875
        %v1045 = vpop.f32.mrf.mxu0
        %v1046 = vadd.f32 %v905, %v1045
        %v1047 = vpop.f32.mrf.mxu0
        %v1048 = vpop.f32.mrf.mxu0
        %v1049 = vadd.f32 %v905, %v1048
        %v1050 = vpop.f32.mrf.mxu0
        %1051 = vmatprep.mubr.bf16.mxu0 0
        %1052 = vmatmul.mubr.bf16.gmra.mxu0 %v876
        %v1053 = vpop.f32.mrf.mxu0
        %v1054 = vadd.f32 %v905, %v1053
        %v1055 = vpop.f32.mrf.mxu0
        %v1056 = vpop.f32.mrf.mxu0
        %v1057 = vadd.f32 %v905, %v1056
        %v1058 = vpop.f32.mrf.mxu0
        %1059 = vmatprep.mubr.bf16.mxu0 0
        %1060 = vmatmul.mubr.bf16.gmra.mxu0 %v877
        %v1061 = vpop.f32.mrf.mxu0
        %v1062 = vadd.f32 %v905, %v1061
        %v1063 = vpop.f32.mrf.mxu0
        %v1064 = vpop.f32.mrf.mxu0
        %v1065 = vadd.f32 %v905, %v1064
        %v1066 = vpop.f32.mrf.mxu0
        %1067 = vmatprep.mubr.bf16.mxu0 0
        %1068 = vmatmul.mubr.bf16.gmra.mxu0 %v878
        %v1069 = vpop.f32.mrf.mxu0
        %v1070 = vadd.f32 %v905, %v1069
        %v1071 = vpop.f32.mrf.mxu0
        %v1072 = vpop.f32.mrf.mxu0
        %v1073 = vadd.f32 %v905, %v1072
        %v1074 = vpop.f32.mrf.mxu0
        %1075 = vmatprep.mubr.bf16.mxu0 0
        %1076 = vmatmul.mubr.bf16.gmra.mxu0 %v879
        %v1077 = vpop.f32.mrf.mxu0
        %v1078 = vadd.f32 %v905, %v1077
        %v1079 = vpop.f32.mrf.mxu0
        %v1080 = vpop.f32.mrf.mxu0
        %v1081 = vadd.f32 %v905, %v1080
        %v1082 = vpop.f32.mrf.mxu0
        %1083 = vmatprep.mubr.bf16.mxu0 0
        %1084 = vmatmul.mubr.bf16.gmra.mxu0 %v880
        %v1085 = vpop.f32.mrf.mxu0
        %v1086 = vadd.f32 %v905, %v1085
        %v1087 = vpop.f32.mrf.mxu0
        %v1088 = vpop.f32.mrf.mxu0
        %v1089 = vadd.f32 %v905, %v1088
        %v1090 = vpop.f32.mrf.mxu0
        %1091 = vmatprep.mubr.bf16.mxu0 0
        %1092 = vmatmul.mubr.bf16.gmra.mxu0 %v881
        %v1093 = vpop.f32.mrf.mxu0
        %v1094 = vadd.f32 %v905, %v1093
        %v1095 = vpop.f32.mrf.mxu0
        %v1096 = vpop.f32.mrf.mxu0
        %v1097 = vadd.f32 %v905, %v1096
        %v1098 = vpop.f32.mrf.mxu0
        %1099 = vmatprep.mubr.bf16.mxu0 0
        %1100 = vmatmul.mubr.bf16.gmra.mxu0 %v882
        %v1101 = vpop.f32.mrf.mxu0
        %v1102 = vadd.f32 %v905, %v1101
        %v1103 = vpop.f32.mrf.mxu0
        %v1104 = vpop.f32.mrf.mxu0
        %v1105 = vadd.f32 %v905, %v1104
        %v1106 = vpop.f32.mrf.mxu0
        %1107 = vmatprep.mubr.bf16.mxu0 0
        %1108 = vmatmul.mubr.bf16.gmra.mxu0 %v883
        %v1109 = vpop.f32.mrf.mxu0
        %v1110 = vadd.f32 %v905, %v1109
        %v1111 = vpop.f32.mrf.mxu0
        %v1112 = vpop.f32.mrf.mxu0
        %v1113 = vadd.f32 %v905, %v1112
        %v1114 = vpop.f32.mrf.mxu0
        %1115 = vdwg.mxu0
        %vm1116 = vcmp.ge.f32.partialorder %v990, 0.0
        %vm1117 = vcmp.ge.f32.partialorder %v993, 0.0
        %vm1118 = vcmp.ge.f32.partialorder %v998, 0.0
        %vm1119 = vcmp.ge.f32.partialorder %v1001, 0.0
        %vm1120 = vcmp.ge.f32.partialorder %v1006, 0.0
        %vm1121 = vcmp.ge.f32.partialorder %v1009, 0.0
        %vm1122 = vcmp.ge.f32.partialorder %v1014, 0.0
        %vm1123 = vcmp.ge.f32.partialorder %v1017, 0.0
        %vm1124 = vcmp.ge.f32.partialorder %v1022, 0.0
        %vm1125 = vcmp.ge.f32.partialorder %v1025, 0.0
        %vm1126 = vcmp.ge.f32.partialorder %v1030, 0.0
        %vm1127 = vcmp.ge.f32.partialorder %v1033, 0.0
        %vm1128 = vcmp.ge.f32.partialorder %v1038, 0.0
        %vm1129 = vcmp.ge.f32.partialorder %v1041, 0.0
        %vm1130 = vcmp.ge.f32.partialorder %v1046, 0.0
        %vm1131 = vcmp.ge.f32.partialorder %v1049, 0.0
        %vm1132 = vcmp.ge.f32.partialorder %v1054, 0.0
        %vm1133 = vcmp.ge.f32.partialorder %v1057, 0.0
        %vm1134 = vcmp.ge.f32.partialorder %v1062, 0.0
        %vm1135 = vcmp.ge.f32.partialorder %v1065, 0.0
        %vm1136 = vcmp.ge.f32.partialorder %v1070, 0.0
        %vm1137 = vcmp.ge.f32.partialorder %v1073, 0.0
        %vm1138 = vcmp.ge.f32.partialorder %v1078, 0.0
        %vm1139 = vcmp.ge.f32.partialorder %v1081, 0.0
        %vm1140 = vcmp.ge.f32.partialorder %v1086, 0.0
        %vm1141 = vcmp.ge.f32.partialorder %v1089, 0.0
        %vm1142 = vcmp.ge.f32.partialorder %v1094, 0.0
        %vm1143 = vcmp.ge.f32.partialorder %v1097, 0.0
        %vm1144 = vcmp.ge.f32.partialorder %v1102, 0.0
        %vm1145 = vcmp.ge.f32.partialorder %v1105, 0.0
        %vm1146 = vcmp.ge.f32.partialorder %v1110, 0.0
        %vm1147 = vcmp.ge.f32.partialorder %v1113, 0.0
        %v1148 = vmul.f32 %v990, 0.01
        %v1149 = vmul.f32 %v993, 0.01
        %v1150 = vmul.f32 %v998, 0.01
        %v1151 = vmul.f32 %v1001, 0.01
        %v1152 = vmul.f32 %v1006, 0.01
        %v1153 = vmul.f32 %v1009, 0.01
        %v1154 = vmul.f32 %v1014, 0.01
        %v1155 = vmul.f32 %v1017, 0.01
        %v1156 = vmul.f32 %v1022, 0.01
        %v1157 = vmul.f32 %v1025, 0.01
        %v1158 = vmul.f32 %v1030, 0.01
        %v1159 = vmul.f32 %v1033, 0.01
        %v1160 = vmul.f32 %v1038, 0.01
        %v1161 = vmul.f32 %v1041, 0.01
        %v1162 = vmul.f32 %v1046, 0.01
        %v1163 = vmul.f32 %v1049, 0.01
        %v1164 = vmul.f32 %v1054, 0.01
        %v1165 = vmul.f32 %v1057, 0.01
        %v1166 = vmul.f32 %v1062, 0.01
        %v1167 = vmul.f32 %v1065, 0.01
        %v1168 = vmul.f32 %v1070, 0.01
        %v1169 = vmul.f32 %v1073, 0.01
        %v1170 = vmul.f32 %v1078, 0.01
        %v1171 = vmul.f32 %v1081, 0.01
        %v1172 = vmul.f32 %v1086, 0.01
        %v1173 = vmul.f32 %v1089, 0.01
        %v1174 = vmul.f32 %v1094, 0.01
        %v1175 = vmul.f32 %v1097, 0.01
        %v1176 = vmul.f32 %v1102, 0.01
        %v1177 = vmul.f32 %v1105, 0.01
        %v1178 = vmul.f32 %v1110, 0.01
        %v1179 = vmul.f32 %v1113, 0.01
        %v1180 = vsel %vm1116, %v990, %v1148
        %v1181 = vsel %vm1117, %v993, %v1149
        %v1182 = vsel %vm1118, %v998, %v1150
        %v1183 = vsel %vm1119, %v1001, %v1151
        %v1184 = vsel %vm1120, %v1006, %v1152
        %v1185 = vsel %vm1121, %v1009, %v1153
        %v1186 = vsel %vm1122, %v1014, %v1154
        %v1187 = vsel %vm1123, %v1017, %v1155
        %v1188 = vsel %vm1124, %v1022, %v1156
        %v1189 = vsel %vm1125, %v1025, %v1157
        %v1190 = vsel %vm1126, %v1030, %v1158
        %v1191 = vsel %vm1127, %v1033, %v1159
        %v1192 = vsel %vm1128, %v1038, %v1160
        %v1193 = vsel %vm1129, %v1041, %v1161
        %v1194 = vsel %vm1130, %v1046, %v1162
        %v1195 = vsel %vm1131, %v1049, %v1163
        %v1196 = vsel %vm1132, %v1054, %v1164
        %v1197 = vsel %vm1133, %v1057, %v1165
        %v1198 = vsel %vm1134, %v1062, %v1166
        %v1199 = vsel %vm1135, %v1065, %v1167
        %v1200 = vsel %vm1136, %v1070, %v1168
        %v1201 = vsel %vm1137, %v1073, %v1169
        %v1202 = vsel %vm1138, %v1078, %v1170
        %v1203 = vsel %vm1139, %v1081, %v1171
        %v1204 = vsel %vm1140, %v1086, %v1172
        %v1205 = vsel %vm1141, %v1089, %v1173
        %v1206 = vsel %vm1142, %v1094, %v1174
        %v1207 = vsel %vm1143, %v1097, %v1175
        %v1208 = vsel %vm1144, %v1102, %v1176
        %v1209 = vsel %vm1145, %v1105, %v1177
        %v1210 = vsel %vm1146, %v1110, %v1178
        %v1211 = vsel %vm1147, %v1113, %v1179
        %v1212 = vpack.c.bf16 %v1181, %v1180
        %v1213 = vpack.c.bf16 %v1183, %v1182
        %v1214 = vpack.c.bf16 %v1185, %v1184
        %v1215 = vpack.c.bf16 %v1187, %v1186
        %v1216 = vpack.c.bf16 %v1189, %v1188
        %v1217 = vpack.c.bf16 %v1191, %v1190
        %v1218 = vpack.c.bf16 %v1193, %v1192
        %v1219 = vpack.c.bf16 %v1195, %v1194
        %v1220 = vpack.c.bf16 %v1197, %v1196
        %v1221 = vpack.c.bf16 %v1199, %v1198
        %v1222 = vpack.c.bf16 %v1201, %v1200
        %v1223 = vpack.c.bf16 %v1203, %v1202
        %v1224 = vpack.c.bf16 %v1205, %v1204
        %v1225 = vpack.c.bf16 %v1207, %v1206
        %v1226 = vpack.c.bf16 %v1209, %v1208
        %v1227 = vpack.c.bf16 %v1211, %v1210
        %v1228 = vld [vmem:[#allocation8] sm:$0xf]
        %v1229 = vld [vmem:[#allocation8 + $0x4] sm:$0xf]
        %v1230 = vld [vmem:[#allocation8 + $0x8] sm:$0xf]
        %v1231 = vld [vmem:[#allocation8 + $0xc] sm:$0xf]
        %v1232 = vld [vmem:[#allocation8 + $0x10] sm:$0xf]
        %v1233 = vld [vmem:[#allocation8 + $0x14] sm:$0xf]
        %v1234 = vld [vmem:[#allocation8 + $0x18] sm:$0xf]
        %v1235 = vld [vmem:[#allocation8 + $0x1c] sm:$0xf]
        %v1236 = vld [vmem:[#allocation8 + $0x20] sm:$0xf]
        %v1237 = vld [vmem:[#allocation8 + $0x24] sm:$0xf]
        %v1238 = vld [vmem:[#allocation8 + $0x28] sm:$0xf]
        %v1239 = vld [vmem:[#allocation8 + $0x2c] sm:$0xf]
        %v1240 = vld [vmem:[#allocation8 + $0x30] sm:$0xf]
        %v1241 = vld [vmem:[#allocation8 + $0x34] sm:$0xf]
        %v1242 = vld [vmem:[#allocation8 + $0x38] sm:$0xf]
        %v1243 = vld [vmem:[#allocation8 + $0x3c] sm:$0xf]
        %v1244 = vld [vmem:[%s6] sm:$0x1]
        %v1246 = vlaneseq
        %v1247 = vshrl.u32 %v1246, 7
        %v1248 = vsub.s32 0, %v1247
        %v1249 = vrot.slane %v1244, %v1248
        %v1267 = vunpack.c.l.b16 %v1228
        %v1268 = vunpack.c.l.b16 %v1229
        %v1269 = vunpack.c.l.b16 %v1230
        %v1270 = vunpack.c.l.b16 %v1231
        %v1271 = vunpack.c.l.b16 %v1232
        %v1272 = vunpack.c.l.b16 %v1233
        %v1273 = vunpack.c.l.b16 %v1234
        %v1274 = vunpack.c.l.b16 %v1235
        %v1275 = vunpack.c.l.b16 %v1236
        %v1276 = vunpack.c.l.b16 %v1237
        %v1277 = vunpack.c.l.b16 %v1238
        %v1278 = vunpack.c.l.b16 %v1239
        %v1279 = vunpack.c.l.b16 %v1240
        %v1280 = vunpack.c.l.b16 %v1241
        %v1281 = vunpack.c.l.b16 %v1242
        %v1282 = vunpack.c.l.b16 %v1243
        %v1283 = vpack.c.b16 %v1268, %v1267
        %v1284 = vpack.c.b16 %v1270, %v1269
        %v1285 = vpack.c.b16 %v1272, %v1271
        %v1286 = vpack.c.b16 %v1274, %v1273
        %v1287 = vpack.c.b16 %v1276, %v1275
        %v1288 = vpack.c.b16 %v1278, %v1277
        %v1289 = vpack.c.b16 %v1280, %v1279
        %v1290 = vpack.c.b16 %v1282, %v1281
        %1299 = vmatprep.subr.bf16.mxu0 0
        %1300 = vmatpush1.bf16.msra.mxu0 %v1290
        %1301 = vmatprep.subr.bf16.mxu0 0
        %1302 = vmatpush1.bf16.msra.mxu0 %v1289
        %1303 = vmatprep.subr.bf16.mxu0 0
        %1304 = vmatpush1.bf16.msra.mxu0 %v1288
        %1305 = vmatprep.subr.bf16.mxu0 0
        %1306 = vmatpush1.bf16.msra.mxu0 %v1287
        %1307 = vmatprep.subr.bf16.mxu0 0
        %1308 = vmatpush1.bf16.msra.mxu0 %v1286
        %1309 = vmatprep.subr.bf16.mxu0 0
        %1310 = vmatpush1.bf16.msra.mxu0 %v1285
        %1311 = vmatprep.subr.bf16.mxu0 0
        %1312 = vmatpush1.bf16.msra.mxu0 %v1284
        %1313 = vmatprep.subr.bf16.mxu0 0
        %1314 = vmatpush1.bf16.msra.mxu0 %v1283
        %1315 = vmatprep.subr.bf16.mxu0 0
        %1316 = vmatpush2.bf16.msra.mxu0 0
        %1317 = vmatprep.subr.bf16.mxu0 0
        %1318 = vmatpush2.bf16.msra.mxu0 0
        %1319 = vmatprep.subr.bf16.mxu0 0
        %1320 = vmatpush2.bf16.msra.mxu0 0
        %1321 = vmatprep.subr.bf16.mxu0 0
        %1322 = vmatpush2.bf16.msra.mxu0 0
        %1323 = vmatprep.subr.bf16.mxu0 0
        %1324 = vmatpush2.bf16.msra.mxu0 0
        %1325 = vmatprep.subr.bf16.mxu0 0
        %1326 = vmatpush2.bf16.msra.mxu0 0
        %1327 = vmatprep.subr.bf16.mxu0 0
        %1328 = vmatpush2.bf16.msra.mxu0 0
        %1329 = vmatprep.subr.bf16.mxu0 0
        %1330 = vmatpush2.bf16.msra.mxu0 0
        %1331 = vmatprep.mubr.bf16.mxu0 0
        %1332 = vmatmul.mubr.bf16.gmra.mxu0 %v1212
        %v1333 = vpop.f32.mrf.mxu0
        %v1334 = vadd.f32 %v1249, %v1333
        %v1335 = vpop.f32.mrf.mxu0
        %v1336 = vpop.f32.mrf.mxu0
        %v1337 = vadd.f32 %v1249, %v1336
        %v1338 = vpop.f32.mrf.mxu0
        %1339 = vmatprep.mubr.bf16.mxu0 0
        %1340 = vmatmul.mubr.bf16.gmra.mxu0 %v1213
        %v1341 = vpop.f32.mrf.mxu0
        %v1342 = vadd.f32 %v1249, %v1341
        %v1343 = vpop.f32.mrf.mxu0
        %v1344 = vpop.f32.mrf.mxu0
        %v1345 = vadd.f32 %v1249, %v1344
        %v1346 = vpop.f32.mrf.mxu0
        %1347 = vmatprep.mubr.bf16.mxu0 0
        %1348 = vmatmul.mubr.bf16.gmra.mxu0 %v1214
        %v1349 = vpop.f32.mrf.mxu0
        %v1350 = vadd.f32 %v1249, %v1349
        %v1351 = vpop.f32.mrf.mxu0
        %v1352 = vpop.f32.mrf.mxu0
        %v1353 = vadd.f32 %v1249, %v1352
        %v1354 = vpop.f32.mrf.mxu0
        %1355 = vmatprep.mubr.bf16.mxu0 0
        %1356 = vmatmul.mubr.bf16.gmra.mxu0 %v1215
        %v1357 = vpop.f32.mrf.mxu0
        %v1358 = vadd.f32 %v1249, %v1357
        %v1359 = vpop.f32.mrf.mxu0
        %v1360 = vpop.f32.mrf.mxu0
        %v1361 = vadd.f32 %v1249, %v1360
        %v1362 = vpop.f32.mrf.mxu0
        %1363 = vmatprep.mubr.bf16.mxu0 0
        %1364 = vmatmul.mubr.bf16.gmra.mxu0 %v1216
        %v1365 = vpop.f32.mrf.mxu0
        %v1366 = vadd.f32 %v1249, %v1365
        %v1367 = vpop.f32.mrf.mxu0
        %v1368 = vpop.f32.mrf.mxu0
        %v1369 = vadd.f32 %v1249, %v1368
        %v1370 = vpop.f32.mrf.mxu0
        %1371 = vmatprep.mubr.bf16.mxu0 0
        %1372 = vmatmul.mubr.bf16.gmra.mxu0 %v1217
        %v1373 = vpop.f32.mrf.mxu0
        %v1374 = vadd.f32 %v1249, %v1373
        %v1375 = vpop.f32.mrf.mxu0
        %v1376 = vpop.f32.mrf.mxu0
        %v1377 = vadd.f32 %v1249, %v1376
        %v1378 = vpop.f32.mrf.mxu0
        %1379 = vmatprep.mubr.bf16.mxu0 0
        %1380 = vmatmul.mubr.bf16.gmra.mxu0 %v1218
        %v1381 = vpop.f32.mrf.mxu0
        %v1382 = vadd.f32 %v1249, %v1381
        %v1383 = vpop.f32.mrf.mxu0
        %v1384 = vpop.f32.mrf.mxu0
        %v1385 = vadd.f32 %v1249, %v1384
        %v1386 = vpop.f32.mrf.mxu0
        %1387 = vmatprep.mubr.bf16.mxu0 0
        %1388 = vmatmul.mubr.bf16.gmra.mxu0 %v1219
        %v1389 = vpop.f32.mrf.mxu0
        %v1390 = vadd.f32 %v1249, %v1389
        %v1391 = vpop.f32.mrf.mxu0
        %v1392 = vpop.f32.mrf.mxu0
        %v1393 = vadd.f32 %v1249, %v1392
        %v1394 = vpop.f32.mrf.mxu0
        %1395 = vmatprep.mubr.bf16.mxu0 0
        %1396 = vmatmul.mubr.bf16.gmra.mxu0 %v1220
        %v1397 = vpop.f32.mrf.mxu0
        %v1398 = vadd.f32 %v1249, %v1397
        %v1399 = vpop.f32.mrf.mxu0
        %v1400 = vpop.f32.mrf.mxu0
        %v1401 = vadd.f32 %v1249, %v1400
        %v1402 = vpop.f32.mrf.mxu0
        %1403 = vmatprep.mubr.bf16.mxu0 0
        %1404 = vmatmul.mubr.bf16.gmra.mxu0 %v1221
        %v1405 = vpop.f32.mrf.mxu0
        %v1406 = vadd.f32 %v1249, %v1405
        %v1407 = vpop.f32.mrf.mxu0
        %v1408 = vpop.f32.mrf.mxu0
        %v1409 = vadd.f32 %v1249, %v1408
        %v1410 = vpop.f32.mrf.mxu0
        %1411 = vmatprep.mubr.bf16.mxu0 0
        %1412 = vmatmul.mubr.bf16.gmra.mxu0 %v1222
        %v1413 = vpop.f32.mrf.mxu0
        %v1414 = vadd.f32 %v1249, %v1413
        %v1415 = vpop.f32.mrf.mxu0
        %v1416 = vpop.f32.mrf.mxu0
        %v1417 = vadd.f32 %v1249, %v1416
        %v1418 = vpop.f32.mrf.mxu0
        %1419 = vmatprep.mubr.bf16.mxu0 0
        %1420 = vmatmul.mubr.bf16.gmra.mxu0 %v1223
        %v1421 = vpop.f32.mrf.mxu0
        %v1422 = vadd.f32 %v1249, %v1421
        %v1423 = vpop.f32.mrf.mxu0
        %v1424 = vpop.f32.mrf.mxu0
        %v1425 = vadd.f32 %v1249, %v1424
        %v1426 = vpop.f32.mrf.mxu0
        %1427 = vmatprep.mubr.bf16.mxu0 0
        %1428 = vmatmul.mubr.bf16.gmra.mxu0 %v1224
        %v1429 = vpop.f32.mrf.mxu0
        %v1430 = vadd.f32 %v1249, %v1429
        %v1431 = vpop.f32.mrf.mxu0
        %v1432 = vpop.f32.mrf.mxu0
        %v1433 = vadd.f32 %v1249, %v1432
        %v1434 = vpop.f32.mrf.mxu0
        %1435 = vmatprep.mubr.bf16.mxu0 0
        %1436 = vmatmul.mubr.bf16.gmra.mxu0 %v1225
        %v1437 = vpop.f32.mrf.mxu0
        %v1438 = vadd.f32 %v1249, %v1437
        %v1439 = vpop.f32.mrf.mxu0
        %v1440 = vpop.f32.mrf.mxu0
        %v1441 = vadd.f32 %v1249, %v1440
        %v1442 = vpop.f32.mrf.mxu0
        %1443 = vmatprep.mubr.bf16.mxu0 0
        %1444 = vmatmul.mubr.bf16.gmra.mxu0 %v1226
        %v1445 = vpop.f32.mrf.mxu0
        %v1446 = vadd.f32 %v1249, %v1445
        %v1447 = vpop.f32.mrf.mxu0
        %v1448 = vpop.f32.mrf.mxu0
        %v1449 = vadd.f32 %v1249, %v1448
        %v1450 = vpop.f32.mrf.mxu0
        %1451 = vmatprep.mubr.bf16.mxu0 0
        %1452 = vmatmul.mubr.bf16.gmra.mxu0 %v1227
        %v1453 = vpop.f32.mrf.mxu0
        %v1454 = vadd.f32 %v1249, %v1453
        %v1455 = vpop.f32.mrf.mxu0
        %v1456 = vpop.f32.mrf.mxu0
        %v1457 = vadd.f32 %v1249, %v1456
        %v1458 = vpop.f32.mrf.mxu0
        %1459 = vdwg.mxu0
        %v1460 = vxor.u32 %v1334, 2147483648
        %v1461 = vxor.u32 %v1337, 2147483648
        %v1462 = vxor.u32 %v1342, 2147483648
        %v1463 = vxor.u32 %v1345, 2147483648
        %v1464 = vxor.u32 %v1350, 2147483648
        %v1465 = vxor.u32 %v1353, 2147483648
        %v1466 = vxor.u32 %v1358, 2147483648
        %v1467 = vxor.u32 %v1361, 2147483648
        %v1468 = vxor.u32 %v1366, 2147483648
        %v1469 = vxor.u32 %v1369, 2147483648
        %v1470 = vxor.u32 %v1374, 2147483648
        %v1471 = vxor.u32 %v1377, 2147483648
        %v1472 = vxor.u32 %v1382, 2147483648
        %v1473 = vxor.u32 %v1385, 2147483648
        %v1474 = vxor.u32 %v1390, 2147483648
        %v1475 = vxor.u32 %v1393, 2147483648
        %v1476 = vxor.u32 %v1398, 2147483648
        %v1477 = vxor.u32 %v1401, 2147483648
        %v1478 = vxor.u32 %v1406, 2147483648
        %v1479 = vxor.u32 %v1409, 2147483648
        %v1480 = vxor.u32 %v1414, 2147483648
        %v1481 = vxor.u32 %v1417, 2147483648
        %v1482 = vxor.u32 %v1422, 2147483648
        %v1483 = vxor.u32 %v1425, 2147483648
        %v1484 = vxor.u32 %v1430, 2147483648
        %v1485 = vxor.u32 %v1433, 2147483648
        %v1486 = vxor.u32 %v1438, 2147483648
        %v1487 = vxor.u32 %v1441, 2147483648
        %v1488 = vxor.u32 %v1446, 2147483648
        %v1489 = vxor.u32 %v1449, 2147483648
        %v1490 = vxor.u32 %v1454, 2147483648
        %v1491 = vxor.u32 %v1457, 2147483648
        %v1492 = vmul.f32 %v1460, 1.442695
        %v1493 = vpow.pop %v1492
        %v1494 = vmul.f32 %v1461, 1.442695
        %v1495 = vpow.pop %v1494
        %v1496 = vmul.f32 %v1462, 1.442695
        %v1497 = vpow.pop %v1496
        %v1498 = vmul.f32 %v1463, 1.442695
        %v1499 = vpow.pop %v1498
        %v1500 = vmul.f32 %v1464, 1.442695
        %v1501 = vpow.pop %v1500
        %v1502 = vmul.f32 %v1465, 1.442695
        %v1503 = vpow.pop %v1502
        %v1504 = vmul.f32 %v1466, 1.442695
        %v1505 = vpow.pop %v1504
        %v1506 = vmul.f32 %v1467, 1.442695
        %v1507 = vpow.pop %v1506
        %v1508 = vmul.f32 %v1468, 1.442695
        %v1509 = vpow.pop %v1508
        %v1510 = vmul.f32 %v1469, 1.442695
        %v1511 = vpow.pop %v1510
        %v1512 = vmul.f32 %v1470, 1.442695
        %v1513 = vpow.pop %v1512
        %v1514 = vmul.f32 %v1471, 1.442695
        %v1515 = vpow.pop %v1514
        %v1516 = vmul.f32 %v1472, 1.442695
        %v1517 = vpow.pop %v1516
        %v1518 = vmul.f32 %v1473, 1.442695
        %v1519 = vpow.pop %v1518
        %v1520 = vmul.f32 %v1474, 1.442695
        %v1521 = vpow.pop %v1520
        %v1522 = vmul.f32 %v1475, 1.442695
        %v1523 = vpow.pop %v1522
        %v1524 = vmul.f32 %v1476, 1.442695
        %v1525 = vpow.pop %v1524
        %v1526 = vmul.f32 %v1477, 1.442695
        %v1527 = vpow.pop %v1526
        %v1528 = vmul.f32 %v1478, 1.442695
        %v1529 = vpow.pop %v1528
        %v1530 = vmul.f32 %v1479, 1.442695
        %v1531 = vpow.pop %v1530
        %v1532 = vmul.f32 %v1480, 1.442695
        %v1533 = vpow.pop %v1532
        %v1534 = vmul.f32 %v1481, 1.442695
        %v1535 = vpow.pop %v1534
        %v1536 = vmul.f32 %v1482, 1.442695
        %v1537 = vpow.pop %v1536
        %v1538 = vmul.f32 %v1483, 1.442695
        %v1539 = vpow.pop %v1538
        %v1540 = vmul.f32 %v1484, 1.442695
        %v1541 = vpow.pop %v1540
        %v1542 = vmul.f32 %v1485, 1.442695
        %v1543 = vpow.pop %v1542
        %v1544 = vmul.f32 %v1486, 1.442695
        %v1545 = vpow.pop %v1544
        %v1546 = vmul.f32 %v1487, 1.442695
        %v1547 = vpow.pop %v1546
        %v1548 = vmul.f32 %v1488, 1.442695
        %v1549 = vpow.pop %v1548
        %v1550 = vmul.f32 %v1489, 1.442695
        %v1551 = vpow.pop %v1550
        %v1552 = vmul.f32 %v1490, 1.442695
        %v1553 = vpow.pop %v1552
        %v1554 = vmul.f32 %v1491, 1.442695
        %v1555 = vpow.pop %v1554
        %v1556 = vadd.f32 %v1493, 1.0
        %v1557 = vadd.f32 %v1495, 1.0
        %v1558 = vadd.f32 %v1497, 1.0
        %v1559 = vadd.f32 %v1499, 1.0
        %v1560 = vadd.f32 %v1501, 1.0
        %v1561 = vadd.f32 %v1503, 1.0
        %v1562 = vadd.f32 %v1505, 1.0
        %v1563 = vadd.f32 %v1507, 1.0
        %v1564 = vadd.f32 %v1509, 1.0
        %v1565 = vadd.f32 %v1511, 1.0
        %v1566 = vadd.f32 %v1513, 1.0
        %v1567 = vadd.f32 %v1515, 1.0
        %v1568 = vadd.f32 %v1517, 1.0
        %v1569 = vadd.f32 %v1519, 1.0
        %v1570 = vadd.f32 %v1521, 1.0
        %v1571 = vadd.f32 %v1523, 1.0
        %v1572 = vadd.f32 %v1525, 1.0
        %v1573 = vadd.f32 %v1527, 1.0
        %v1574 = vadd.f32 %v1529, 1.0
        %v1575 = vadd.f32 %v1531, 1.0
        %v1576 = vadd.f32 %v1533, 1.0
        %v1577 = vadd.f32 %v1535, 1.0
        %v1578 = vadd.f32 %v1537, 1.0
        %v1579 = vadd.f32 %v1539, 1.0
        %v1580 = vadd.f32 %v1541, 1.0
        %v1581 = vadd.f32 %v1543, 1.0
        %v1582 = vadd.f32 %v1545, 1.0
        %v1583 = vadd.f32 %v1547, 1.0
        %v1584 = vadd.f32 %v1549, 1.0
        %v1585 = vadd.f32 %v1551, 1.0
        %v1586 = vadd.f32 %v1553, 1.0
        %v1587 = vadd.f32 %v1555, 1.0
        %v1588 = vrcp.pop %v1556
        %v1589 = vmul.f32 1.0, %v1588
        %v1590 = vrcp.pop %v1557
        %v1591 = vmul.f32 1.0, %v1590
        %v1592 = vrcp.pop %v1558
        %v1593 = vmul.f32 1.0, %v1592
        %v1594 = vrcp.pop %v1559
        %v1595 = vmul.f32 1.0, %v1594
        %v1596 = vrcp.pop %v1560
        %v1597 = vmul.f32 1.0, %v1596
        %v1598 = vrcp.pop %v1561
        %v1599 = vmul.f32 1.0, %v1598
        %v1600 = vrcp.pop %v1562
        %v1601 = vmul.f32 1.0, %v1600
        %v1602 = vrcp.pop %v1563
        %v1603 = vmul.f32 1.0, %v1602
        %v1604 = vrcp.pop %v1564
        %v1605 = vmul.f32 1.0, %v1604
        %v1606 = vrcp.pop %v1565
        %v1607 = vmul.f32 1.0, %v1606
        %v1608 = vrcp.pop %v1566
        %v1609 = vmul.f32 1.0, %v1608
        %v1610 = vrcp.pop %v1567
        %v1611 = vmul.f32 1.0, %v1610
        %v1612 = vrcp.pop %v1568
        %v1613 = vmul.f32 1.0, %v1612
        %v1614 = vrcp.pop %v1569
        %v1615 = vmul.f32 1.0, %v1614
        %v1616 = vrcp.pop %v1570
        %v1617 = vmul.f32 1.0, %v1616
        %v1618 = vrcp.pop %v1571
        %v1619 = vmul.f32 1.0, %v1618
        %v1620 = vrcp.pop %v1572
        %v1621 = vmul.f32 1.0, %v1620
        %v1622 = vrcp.pop %v1573
        %v1623 = vmul.f32 1.0, %v1622
        %v1624 = vrcp.pop %v1574
        %v1625 = vmul.f32 1.0, %v1624
        %v1626 = vrcp.pop %v1575
        %v1627 = vmul.f32 1.0, %v1626
        %v1628 = vrcp.pop %v1576
        %v1629 = vmul.f32 1.0, %v1628
        %v1630 = vrcp.pop %v1577
        %v1631 = vmul.f32 1.0, %v1630
        %v1632 = vrcp.pop %v1578
        %v1633 = vmul.f32 1.0, %v1632
        %v1634 = vrcp.pop %v1579
        %v1635 = vmul.f32 1.0, %v1634
        %v1636 = vrcp.pop %v1580
        %v1637 = vmul.f32 1.0, %v1636
        %v1638 = vrcp.pop %v1581
        %v1639 = vmul.f32 1.0, %v1638
        %v1640 = vrcp.pop %v1582
        %v1641 = vmul.f32 1.0, %v1640
        %v1642 = vrcp.pop %v1583
        %v1643 = vmul.f32 1.0, %v1642
        %v1644 = vrcp.pop %v1584
        %v1645 = vmul.f32 1.0, %v1644
        %v1646 = vrcp.pop %v1585
        %v1647 = vmul.f32 1.0, %v1646
        %v1648 = vrcp.pop %v1586
        %v1649 = vmul.f32 1.0, %v1648
        %v1650 = vrcp.pop %v1587
        %v1651 = vmul.f32 1.0, %v1650
        %v1652 = vpack.c.bf16 %v1591, %v1589
        %v1653 = vpack.c.bf16 %v1595, %v1593
        %v1654 = vpack.c.bf16 %v1599, %v1597
        %v1655 = vpack.c.bf16 %v1603, %v1601
        %v1656 = vpack.c.bf16 %v1607, %v1605
        %v1657 = vpack.c.bf16 %v1611, %v1609
        %v1658 = vpack.c.bf16 %v1615, %v1613
        %v1659 = vpack.c.bf16 %v1619, %v1617
        %v1660 = vpack.c.bf16 %v1623, %v1621
        %v1661 = vpack.c.bf16 %v1627, %v1625
        %v1662 = vpack.c.bf16 %v1631, %v1629
        %v1663 = vpack.c.bf16 %v1635, %v1633
        %v1664 = vpack.c.bf16 %v1639, %v1637
        %v1665 = vpack.c.bf16 %v1643, %v1641
        %v1666 = vpack.c.bf16 %v1647, %v1645
        %v1667 = vpack.c.bf16 %v1651, %v1649
        %v1668 = vld [vmem:[#allocation10] sm:$0xf]
        %v1669 = vld [vmem:[#allocation10 + $0x4] sm:$0xf]
        %v1670 = vld [vmem:[#allocation10 + $0x8] sm:$0xf]
        %v1671 = vld [vmem:[#allocation10 + $0xc] sm:$0xf]
        %v1672 = vld [vmem:[#allocation10 + $0x10] sm:$0xf]
        %v1673 = vld [vmem:[#allocation10 + $0x14] sm:$0xf]
        %v1674 = vld [vmem:[#allocation10 + $0x18] sm:$0xf]
        %v1675 = vld [vmem:[#allocation10 + $0x1c] sm:$0xf]
        %v1676 = vld [vmem:[#allocation10 + $0x20] sm:$0xf]
        %v1677 = vld [vmem:[#allocation10 + $0x24] sm:$0xf]
        %v1678 = vld [vmem:[#allocation10 + $0x28] sm:$0xf]
        %v1679 = vld [vmem:[#allocation10 + $0x2c] sm:$0xf]
        %v1680 = vld [vmem:[#allocation10 + $0x30] sm:$0xf]
        %v1681 = vld [vmem:[#allocation10 + $0x34] sm:$0xf]
        %v1682 = vld [vmem:[#allocation10 + $0x38] sm:$0xf]
        %v1683 = vld [vmem:[#allocation10 + $0x3c] sm:$0xf]
        %v1684 = vld [vmem:[%s8] sm:$0x1]
        %v1686 = vlaneseq
        %v1687 = vshrl.u32 %v1686, 7
        %v1688 = vsub.s32 0, %v1687
        %v1689 = vrot.slane %v1684, %v1688
        %v1707 = vunpack.c.l.b16 %v1668
        %v1708 = vunpack.c.l.b16 %v1669
        %v1709 = vunpack.c.l.b16 %v1670
        %v1710 = vunpack.c.l.b16 %v1671
        %v1711 = vunpack.c.l.b16 %v1672
        %v1712 = vunpack.c.l.b16 %v1673
        %v1713 = vunpack.c.l.b16 %v1674
        %v1714 = vunpack.c.l.b16 %v1675
        %v1715 = vunpack.c.l.b16 %v1676
        %v1716 = vunpack.c.l.b16 %v1677
        %v1717 = vunpack.c.l.b16 %v1678
        %v1718 = vunpack.c.l.b16 %v1679
        %v1719 = vunpack.c.l.b16 %v1680
        %v1720 = vunpack.c.l.b16 %v1681
        %v1721 = vunpack.c.l.b16 %v1682
        %v1722 = vunpack.c.l.b16 %v1683
        %v1723 = vpack.c.b16 %v1708, %v1707
        %v1724 = vpack.c.b16 %v1710, %v1709
        %v1725 = vpack.c.b16 %v1712, %v1711
        %v1726 = vpack.c.b16 %v1714, %v1713
        %v1727 = vpack.c.b16 %v1716, %v1715
        %v1728 = vpack.c.b16 %v1718, %v1717
        %v1729 = vpack.c.b16 %v1720, %v1719
        %v1730 = vpack.c.b16 %v1722, %v1721
        %1739 = vmatprep.subr.bf16.mxu0 0
        %1740 = vmatpush1.bf16.msra.mxu0 %v1730
        %1741 = vmatprep.subr.bf16.mxu0 0
        %1742 = vmatpush1.bf16.msra.mxu0 %v1729
        %1743 = vmatprep.subr.bf16.mxu0 0
        %1744 = vmatpush1.bf16.msra.mxu0 %v1728
        %1745 = vmatprep.subr.bf16.mxu0 0
        %1746 = vmatpush1.bf16.msra.mxu0 %v1727
        %1747 = vmatprep.subr.bf16.mxu0 0
        %1748 = vmatpush1.bf16.msra.mxu0 %v1726
        %1749 = vmatprep.subr.bf16.mxu0 0
        %1750 = vmatpush1.bf16.msra.mxu0 %v1725
        %1751 = vmatprep.subr.bf16.mxu0 0
        %1752 = vmatpush1.bf16.msra.mxu0 %v1724
        %1753 = vmatprep.subr.bf16.mxu0 0
        %1754 = vmatpush1.bf16.msra.mxu0 %v1723
        %1755 = vmatprep.subr.bf16.mxu0 0
        %1756 = vmatpush2.bf16.msra.mxu0 0
        %1757 = vmatprep.subr.bf16.mxu0 0
        %1758 = vmatpush2.bf16.msra.mxu0 0
        %1759 = vmatprep.subr.bf16.mxu0 0
        %1760 = vmatpush2.bf16.msra.mxu0 0
        %1761 = vmatprep.subr.bf16.mxu0 0
        %1762 = vmatpush2.bf16.msra.mxu0 0
        %1763 = vmatprep.subr.bf16.mxu0 0
        %1764 = vmatpush2.bf16.msra.mxu0 0
        %1765 = vmatprep.subr.bf16.mxu0 0
        %1766 = vmatpush2.bf16.msra.mxu0 0
        %1767 = vmatprep.subr.bf16.mxu0 0
        %1768 = vmatpush2.bf16.msra.mxu0 0
        %1769 = vmatprep.subr.bf16.mxu0 0
        %1770 = vmatpush2.bf16.msra.mxu0 0
        %1771 = vmatprep.mubr.bf16.mxu0 0
        %1772 = vmatmul.mubr.bf16.gmra.mxu0 %v1652
        %v1773 = vpop.f32.mrf.mxu0
        %v1774 = vadd.f32 %v1689, %v1773
        %v1775 = vpop.f32.mrf.mxu0
        %v1776 = vpop.f32.mrf.mxu0
        %v1777 = vadd.f32 %v1689, %v1776
        %v1778 = vpop.f32.mrf.mxu0
        %1779 = vmatprep.mubr.bf16.mxu0 0
        %1780 = vmatmul.mubr.bf16.gmra.mxu0 %v1653
        %v1781 = vpop.f32.mrf.mxu0
        %v1782 = vadd.f32 %v1689, %v1781
        %v1783 = vpop.f32.mrf.mxu0
        %v1784 = vpop.f32.mrf.mxu0
        %v1785 = vadd.f32 %v1689, %v1784
        %v1786 = vpop.f32.mrf.mxu0
        %1787 = vmatprep.mubr.bf16.mxu0 0
        %1788 = vmatmul.mubr.bf16.gmra.mxu0 %v1654
        %v1789 = vpop.f32.mrf.mxu0
        %v1790 = vadd.f32 %v1689, %v1789
        %v1791 = vpop.f32.mrf.mxu0
        %v1792 = vpop.f32.mrf.mxu0
        %v1793 = vadd.f32 %v1689, %v1792
        %v1794 = vpop.f32.mrf.mxu0
        %1795 = vmatprep.mubr.bf16.mxu0 0
        %1796 = vmatmul.mubr.bf16.gmra.mxu0 %v1655
        %v1797 = vpop.f32.mrf.mxu0
        %v1798 = vadd.f32 %v1689, %v1797
        %v1799 = vpop.f32.mrf.mxu0
        %v1800 = vpop.f32.mrf.mxu0
        %v1801 = vadd.f32 %v1689, %v1800
        %v1802 = vpop.f32.mrf.mxu0
        %1803 = vmatprep.mubr.bf16.mxu0 0
        %1804 = vmatmul.mubr.bf16.gmra.mxu0 %v1656
        %v1805 = vpop.f32.mrf.mxu0
        %v1806 = vadd.f32 %v1689, %v1805
        %v1807 = vpop.f32.mrf.mxu0
        %v1808 = vpop.f32.mrf.mxu0
        %v1809 = vadd.f32 %v1689, %v1808
        %v1810 = vpop.f32.mrf.mxu0
        %1811 = vmatprep.mubr.bf16.mxu0 0
        %1812 = vmatmul.mubr.bf16.gmra.mxu0 %v1657
        %v1813 = vpop.f32.mrf.mxu0
        %v1814 = vadd.f32 %v1689, %v1813
        %v1815 = vpop.f32.mrf.mxu0
        %v1816 = vpop.f32.mrf.mxu0
        %v1817 = vadd.f32 %v1689, %v1816
        %v1818 = vpop.f32.mrf.mxu0
        %1819 = vmatprep.mubr.bf16.mxu0 0
        %1820 = vmatmul.mubr.bf16.gmra.mxu0 %v1658
        %v1821 = vpop.f32.mrf.mxu0
        %v1822 = vadd.f32 %v1689, %v1821
        %v1823 = vpop.f32.mrf.mxu0
        %v1824 = vpop.f32.mrf.mxu0
        %v1825 = vadd.f32 %v1689, %v1824
        %v1826 = vpop.f32.mrf.mxu0
        %1827 = vmatprep.mubr.bf16.mxu0 0
        %1828 = vmatmul.mubr.bf16.gmra.mxu0 %v1659
        %v1829 = vpop.f32.mrf.mxu0
        %v1830 = vadd.f32 %v1689, %v1829
        %v1831 = vpop.f32.mrf.mxu0
        %v1832 = vpop.f32.mrf.mxu0
        %v1833 = vadd.f32 %v1689, %v1832
        %v1834 = vpop.f32.mrf.mxu0
        %1835 = vmatprep.mubr.bf16.mxu0 0
        %1836 = vmatmul.mubr.bf16.gmra.mxu0 %v1660
        %v1837 = vpop.f32.mrf.mxu0
        %v1838 = vadd.f32 %v1689, %v1837
        %v1839 = vpop.f32.mrf.mxu0
        %v1840 = vpop.f32.mrf.mxu0
        %v1841 = vadd.f32 %v1689, %v1840
        %v1842 = vpop.f32.mrf.mxu0
        %1843 = vmatprep.mubr.bf16.mxu0 0
        %1844 = vmatmul.mubr.bf16.gmra.mxu0 %v1661
        %v1845 = vpop.f32.mrf.mxu0
        %v1846 = vadd.f32 %v1689, %v1845
        %v1847 = vpop.f32.mrf.mxu0
        %v1848 = vpop.f32.mrf.mxu0
        %v1849 = vadd.f32 %v1689, %v1848
        %v1850 = vpop.f32.mrf.mxu0
        %1851 = vmatprep.mubr.bf16.mxu0 0
        %1852 = vmatmul.mubr.bf16.gmra.mxu0 %v1662
        %v1853 = vpop.f32.mrf.mxu0
        %v1854 = vadd.f32 %v1689, %v1853
        %v1855 = vpop.f32.mrf.mxu0
        %v1856 = vpop.f32.mrf.mxu0
        %v1857 = vadd.f32 %v1689, %v1856
        %v1858 = vpop.f32.mrf.mxu0
        %1859 = vmatprep.mubr.bf16.mxu0 0
        %1860 = vmatmul.mubr.bf16.gmra.mxu0 %v1663
        %v1861 = vpop.f32.mrf.mxu0
        %v1862 = vadd.f32 %v1689, %v1861
        %v1863 = vpop.f32.mrf.mxu0
        %v1864 = vpop.f32.mrf.mxu0
        %v1865 = vadd.f32 %v1689, %v1864
        %v1866 = vpop.f32.mrf.mxu0
        %1867 = vmatprep.mubr.bf16.mxu0 0
        %1868 = vmatmul.mubr.bf16.gmra.mxu0 %v1664
        %v1869 = vpop.f32.mrf.mxu0
        %v1870 = vadd.f32 %v1689, %v1869
        %v1871 = vpop.f32.mrf.mxu0
        %v1872 = vpop.f32.mrf.mxu0
        %v1873 = vadd.f32 %v1689, %v1872
        %v1874 = vpop.f32.mrf.mxu0
        %1875 = vmatprep.mubr.bf16.mxu0 0
        %1876 = vmatmul.mubr.bf16.gmra.mxu0 %v1665
        %v1877 = vpop.f32.mrf.mxu0
        %v1878 = vadd.f32 %v1689, %v1877
        %v1879 = vpop.f32.mrf.mxu0
        %v1880 = vpop.f32.mrf.mxu0
        %v1881 = vadd.f32 %v1689, %v1880
        %v1882 = vpop.f32.mrf.mxu0
        %1883 = vmatprep.mubr.bf16.mxu0 0
        %1884 = vmatmul.mubr.bf16.gmra.mxu0 %v1666
        %v1885 = vpop.f32.mrf.mxu0
        %v1886 = vadd.f32 %v1689, %v1885
        %v1887 = vpop.f32.mrf.mxu0
        %v1888 = vpop.f32.mrf.mxu0
        %v1889 = vadd.f32 %v1689, %v1888
        %v1890 = vpop.f32.mrf.mxu0
        %1891 = vmatprep.mubr.bf16.mxu0 0
        %1892 = vmatmul.mubr.bf16.gmra.mxu0 %v1667
        %v1893 = vpop.f32.mrf.mxu0
        %v1894 = vadd.f32 %v1689, %v1893
        %v1895 = vpop.f32.mrf.mxu0
        %v1896 = vpop.f32.mrf.mxu0
        %v1897 = vadd.f32 %v1689, %v1896
        %v1898 = vpop.f32.mrf.mxu0
        %1899 = vdwg.mxu0
        %1900 = vst [vmem:[%s408] sm:$0xff] %v1774
        %1901 = vst [vmem:[%s408 + $0x8] sm:$0xff] %v1777
        %1902 = vst [vmem:[%s408 + $0x10] sm:$0xff] %v1782
        %1903 = vst [vmem:[%s408 + $0x18] sm:$0xff] %v1785
        %1904 = vst [vmem:[%s408 + $0x20] sm:$0xff] %v1790
        %1905 = vst [vmem:[%s408 + $0x28] sm:$0xff] %v1793
        %1906 = vst [vmem:[%s408 + $0x30] sm:$0xff] %v1798
        %1907 = vst [vmem:[%s408 + $0x38] sm:$0xff] %v1801
        %1908 = vst [vmem:[%s408 + $0x40] sm:$0xff] %v1806
        %1909 = vst [vmem:[%s408 + $0x48] sm:$0xff] %v1809
        %1910 = vst [vmem:[%s408 + $0x50] sm:$0xff] %v1814
        %1911 = vst [vmem:[%s408 + $0x58] sm:$0xff] %v1817
        %1912 = vst [vmem:[%s408 + $0x60] sm:$0xff] %v1822
        %1913 = vst [vmem:[%s408 + $0x68] sm:$0xff] %v1825
        %1914 = vst [vmem:[%s408 + $0x70] sm:$0xff] %v1830
        %1915 = vst [vmem:[%s408 + $0x78] sm:$0xff] %v1833
        %1916 = vst [vmem:[%s408 + $0x80] sm:$0xff] %v1838
        %1917 = vst [vmem:[%s408 + $0x88] sm:$0xff] %v1841
        %1918 = vst [vmem:[%s408 + $0x90] sm:$0xff] %v1846
        %1919 = vst [vmem:[%s408 + $0x98] sm:$0xff] %v1849
        %1920 = vst [vmem:[%s408 + $0xa0] sm:$0xff] %v1854
        %1921 = vst [vmem:[%s408 + $0xa8] sm:$0xff] %v1857
        %1922 = vst [vmem:[%s408 + $0xb0] sm:$0xff] %v1862
        %1923 = vst [vmem:[%s408 + $0xb8] sm:$0xff] %v1865
        %1924 = vst [vmem:[%s408 + $0xc0] sm:$0xff] %v1870
        %1925 = vst [vmem:[%s408 + $0xc8] sm:$0xff] %v1873
        %1926 = vst [vmem:[%s408 + $0xd0] sm:$0xff] %v1878
        %1927 = vst [vmem:[%s408 + $0xd8] sm:$0xff] %v1881
        %1928 = vst [vmem:[%s408 + $0xe0] sm:$0xff] %v1886
        %1929 = vst [vmem:[%s408 + $0xe8] sm:$0xff] %v1889
        %1930 = vst [vmem:[%s408 + $0xf0] sm:$0xff] %v1894
        %1931 = vst [vmem:[%s408 + $0xf8] sm:$0xff] %v1897
        %s1932 = sand.u32 %s230, 1
        %s1933 = scalar_lea.sflag [#allocation4], %s1932
        %s1934 = sand.u32 %s230, 1
        %s1935 = smul.addr %s1934, 256
        %s1936 = scalar_lea.vmem [#allocation11], %s1935
        // Predicated region
        $region77: #{tpu_custom_call.1} parent=55 // pred_check
          %p1937 = pneg %p240
        $region78: #{tpu_custom_call.1} parent=55 // pred_check_branch
          %1939 = sbr.rel (%p1937) target = $region80
        $region79: #{tpu_custom_call.1} parent=55 // pred_region
          %s1940 = smul.u32 32, %s28
          %s1942 = ssub.s32 4096, 4096
          %1943 = vsyncadd %s1933, %s1942
          %s1944 = smul.addr %s1940, 128
          %s1945 = scalar_lea.hbm %s9, %s1944
          %s1946 = sshll.u32 %s1936, 4
          %s1947 = int_to_ptr.vmem [resolvable:$true] %s1946
          %1952 = dma.vmem_to_hbm [thread:$0]  %s1947, 4096, %s1945, %s1933, 128, 128, 8
        $region80: #{tpu_custom_call.1} parent=55 // pred_fallthru
          _
      $region56: #{tpu_custom_call.1} parent=5 // pred_fallthru
        _
      %p1953 = scmp.le.s32.totalorder 2, %s23
      // Predicated region
      $region81: #{tpu_custom_call.1} parent=5 // pred_check
        %p1954 = pneg %p1953
      $region82: #{tpu_custom_call.1} parent=5 // pred_check_branch
        %1956 = sbr.rel (%p1954) target = $region84
      $region83: #{tpu_custom_call.1} parent=5 // pred_region
        %s1957 = ssub.s32 %s23, 2
        // Predicated region
        $region85: #{tpu_custom_call.1} parent=83 // pred_check
          %p1958 = pneg %p246
        $region86: #{tpu_custom_call.1} parent=83 // pred_check_branch
          %1960 = sbr.rel (%p1958) target = $region88
        $region87: #{tpu_custom_call.1} parent=83 // pred_region
          %s1961 = sand.u32 %s231, 1
          %s1962 = scalar_lea.sflag [#allocation4], %s1961
          %s1963 = sand.u32 %s231, 1
          %s1964 = smul.addr %s1963, 256
          %s1965 = scalar_lea.vmem [#allocation11], %s1964
          %1966 = dma.done %s1962, 4096
        $region88: #{tpu_custom_call.1} parent=83 // pred_fallthru
          _
      $region84: #{tpu_custom_call.1} parent=5 // pred_fallthru
        _
    $region6: #{tpu_custom_call.1} parent=1 // loop_footer
      %s27 = sadd.s32 1, %s23
    $region7: #{tpu_custom_call.1} parent=1 // loop_footer_branch
      %22 = sbr.rel target = $region3
    $region8: #{tpu_custom_call.1} parent=1 // loop_exit
      _
    %1967 = vsyncpa [#allocation3], 1
    %s1968 = scalar_lea.sflag [#allocation3], 1
    %1969 = vsyncpa %s1968, 1
    %1970 = vsyncpa [#allocation6], 1
    %1971 = vsyncpa [#allocation9], 1
    %1972 = vsyncpa [#allocation4], 1
    %s1973 = scalar_lea.sflag [#allocation4], 1
    %1974 = vsyncpa %s1973, 1

</llo_original>
